<compile_context>
chip_gen: v7x
topology: tpu7x:2x2x1
jax: 0.10.0
libtpu: 0.0.40
codegen_flags: <defaults>
</compile_context>

<pallas_src>
import jax
import jax.numpy as jnp
from jax import lax
from jax.experimental import pallas as pl
from jax.experimental.pallas import tpu as pltpu

# Small demo shapes (consistent with a 3D fused feature volume).
D = H = W = 8        # spatial dims of the fused feature map
C_IN = 16            # channels of the fused feature map (final.shape[1])
C_MID = 32           # seg_head_first output channels
C_OUT = 1            # out_channels -> Sigmoid branch
EPS = 1e-5           # InstanceNorm3d default eps
DHW = D * H * W
K_TAPS = 27          # 3x3x3


def _seg_head_kernel(p_ref, w1t_ref, w2t_ref, b2_ref, o_ref):
    """One grid step processes `spb` samples.

    p_ref  : (spb, 27*C_IN, DHW) bf16  im2col patch matrices (lane axis = DHW)
    w1t_ref: (C_MID, 27*C_IN)    bf16  3x3x3 conv weights (tap-major columns)
    w2t_ref: (C_OUT, C_MID)      f32   1x1x1 conv weights (transposed)
    b2_ref : (C_OUT, 1)          f32   1x1x1 conv bias
    o_ref  : (spb, C_OUT, DHW)   f32   sigmoid probabilities (lane-dense)
    """
    spb = p_ref.shape[0]
    w1t = w1t_ref[...]            # hoisted: loaded once per grid step
    w2t = w2t_ref[...]
    b2 = b2_ref[...]
    inv_n = 1.0 / float(DHW)

    for s in range(spb):          # static unrolled loop (spb is small)
        # --- 3x3x3 conv as one fused K=432 matmul; (C_MID, DHW) result so the
        #     elementwise path runs on 16 fully lane-dense f32 vregs.
        h = jnp.dot(w1t, p_ref[s], preferred_element_type=jnp.float32)  # (32, 512)

        # --- InstanceNorm3d(32): one-pass sum / sum-of-squares along lanes,
        #     biased variance (clamped >= 0), no affine (PyTorch defaults).
        mean = jnp.sum(h, axis=-1, keepdims=True) * inv_n               # (32, 1)
        ex2 = jnp.sum(h * h, axis=-1, keepdims=True) * inv_n            # (32, 1)
        var = jnp.maximum(ex2 - mean * mean, 0.0)
        h = (h - mean) * lax.rsqrt(var + EPS)

        # --- ReLU
        h = jnp.maximum(h, 0.0)

        # --- 1x1x1 conv (32 -> C_OUT) + bias, then Sigmoid; (1, 512) lane-dense.
        logits = jnp.dot(w2t, h, preferred_element_type=jnp.float32) + b2
        o_ref[s] = jax.nn.sigmoid(logits)


def seg_head_pallas(fused_ncdhw, w1_oidhw, w2, b2, samples_per_step=None):
    """fused_ncdhw: (N, C_IN, D, H, W) -> probabilities (N, C_OUT, D, H, W).

    w1_oidhw: PyTorch Conv3d layout (C_MID, C_IN, 3, 3, 3)
    w2      : (C_MID, C_OUT), b2: (C_OUT,)
    samples_per_step: samples folded into one grid step. Default (None) folds
      the whole batch into a single step (best for single-TC v5e/v6e at demo
      size); on v7x pass N // 2 (or 1) so both TensorCores get work.
    """
    assert C_OUT == 1, "kernel implements the Sigmoid (out_channels == 1) branch"
    n = fused_ncdhw.shape[0]
    assert fused_ncdhw.shape == (n, C_IN, D, H, W), fused_ncdhw.shape
    spb = n if samples_per_step is None else samples_per_step
    assert n % spb == 0, (n, spb)

    # --- Wrapper-side im2col (option (a) from review): build the tap-major
    # patch matrix once, straight from NCDHW (no layout transpose), and cast to
    # bf16 in one shot.  Construction is ordinary XLA work hidden behind the
    # kernel's pipeline DMA.
    x = fused_ncdhw.astype(jnp.float32)
    xp = jnp.pad(x, ((0, 0), (0, 0), (1, 1), (1, 1), (1, 1)))
    cols = []
    for kd in range(3):
        for kh in range(3):
            for kw in range(3):
                cols.append(
                    xp[:, :, kd:kd + D, kh:kh + H, kw:kw + W].reshape(n, C_IN, DHW))
    patches = jnp.concatenate(cols, axis=1).astype(jnp.bfloat16)  # (n, 27*C_IN, DHW)

    # PyTorch (C_out, C_in, kD, kH, kW) -> (C_out, kD, kH, kW, C_in) flattened to
    # (C_MID, 27*C_IN) with tap-major columns (matches patch row order).
    w1t = jnp.transpose(w1_oidhw, (0, 2, 3, 4, 1)).reshape(
        C_MID, K_TAPS * C_IN).astype(jnp.bfloat16)
    w2t = jnp.transpose(w2).astype(jnp.float32)              # (C_OUT, C_MID)
    b2_2d = b2.reshape(C_OUT, 1).astype(jnp.float32)

    out = pl.pallas_call(
        _seg_head_kernel,
        out_shape=jax.ShapeDtypeStruct((n, C_OUT, DHW), jnp.float32),
        grid_spec=pltpu.PrefetchScalarGridSpec(
            num_scalar_prefetch=0,
            grid=(n // spb,),
            in_specs=[
                pl.BlockSpec((spb, K_TAPS * C_IN, DHW), lambda b: (b, 0, 0)),
                pl.BlockSpec((C_MID, K_TAPS * C_IN), lambda b: (0, 0)),
                pl.BlockSpec((C_OUT, C_MID), lambda b: (0, 0)),
                pl.BlockSpec((C_OUT, 1), lambda b: (0, 0)),
            ],
            out_specs=pl.BlockSpec((spb, C_OUT, DHW), lambda b: (b, 0, 0)),
        ),
        compiler_params=pltpu.CompilerParams(
            dimension_semantics=("parallel",),
            # Plenty for demo-size blocks; raise (and add a spatial tile axis)
            # for production volumes.
            vmem_limit_bytes=32 * 1024 * 1024),
    )(patches, w1t, w2t, b2_2d)

    # Lane-dense (n, C_OUT, DHW) kernel output -> NCDHW with a pure reshape.
    return out.reshape(n, C_OUT, D, H, W)


def seg_head_ref(fused_ncdhw, w1_oidhw, w2, b2, conv_dtype=jnp.float32):
    """Pure-JAX reference (same semantics as the PyTorch seg head).

    conv_dtype lets the reference mirror the kernel's precision policy
    (bf16 MXU inputs, f32 accumulation) for a tight numerical check.
    """
    x = jnp.transpose(fused_ncdhw, (0, 2, 3, 4, 1)).astype(jnp.float32)
    w = jnp.transpose(w1_oidhw, (2, 3, 4, 1, 0)).astype(jnp.float32)  # DHWIO
    h = lax.conv_general_dilated(
        x.astype(conv_dtype), w.astype(conv_dtype),
        window_strides=(1, 1, 1), padding="SAME",
        dimension_numbers=("NDHWC", "DHWIO", "NDHWC"),
        preferred_element_type=jnp.float32)
    mean = jnp.mean(h, axis=(1, 2, 3), keepdims=True)
    var = jnp.mean((h - mean) ** 2, axis=(1, 2, 3), keepdims=True)
    h = (h - mean) * lax.rsqrt(var + EPS)
    h = jnp.maximum(h, 0.0)
    logits = jnp.einsum("ndhwc,co->ndhwo", h, w2.astype(jnp.float32))
    logits = logits + b2.reshape(1, 1, 1, 1, C_OUT)
    y = jax.nn.sigmoid(logits)
    return jnp.transpose(y, (0, 4, 1, 2, 3))


if __name__ == "__main__":
    key = jax.random.PRNGKey(0)
    k_x, k_w1, k_w2, k_b2 = jax.random.split(key, 4)

    # Deterministic synthetic fused features and seg-head parameters
    # (w1 in PyTorch Conv3d layout: C_out, C_in, kD, kH, kW).
    fused = jax.random.normal(k_x, (2, C_IN, D, H, W), dtype=jnp.float32)
    fan_in1 = C_IN * 27
    w1 = jax.random.uniform(k_w1, (C_MID, C_IN, 3, 3, 3), dtype=jnp.float32,
                            minval=-1.0, maxval=1.0) / jnp.sqrt(fan_in1)
    w2 = jax.random.uniform(k_w2, (C_MID, C_OUT), dtype=jnp.float32,
                            minval=-1.0, maxval=1.0) / jnp.sqrt(C_MID)
    b2 = jax.random.uniform(k_b2, (C_OUT,), dtype=jnp.float32,
                            minval=-0.1, maxval=0.1)

    # Default: whole batch in one grid step (v5e/v6e-friendly).
    out = seg_head_pallas(fused, w1, w2, b2)
    out = jax.block_until_ready(out)
    assert out.shape == (2, C_OUT, D, H, W), out.shape

    # Tight check vs a reference mirroring the kernel's precision policy
    # (bf16 conv inputs, f32 accumulation).
    ref_bf16 = seg_head_ref(fused, w1, w2, b2, conv_dtype=jnp.bfloat16)
    assert jnp.allclose(out, ref_bf16, rtol=5e-3, atol=5e-4), (
        float(jnp.max(jnp.abs(out - ref_bf16))))

    # Loose check vs the full-f32 PyTorch-equivalent reference (bounds the error
    # introduced by bf16 MXU inputs; sigmoid outputs live in [0, 1]).
    ref_f32 = seg_head_ref(fused, w1, w2, b2, conv_dtype=jnp.float32)
    assert jnp.allclose(out, ref_f32, rtol=2e-2, atol=2e-2), (
        float(jnp.max(jnp.abs(out - ref_f32))))

    # Also exercise the v7x-style configuration (one sample per grid step,
    # "parallel" batch axis across TensorCores) for correctness parity.
    out_per_sample = jax.block_until_ready(
        seg_head_pallas(fused, w1, w2, b2, samples_per_step=1))
    assert jnp.allclose(out, out_per_sample, rtol=1e-6, atol=1e-6)

    print("KERNEL_OK")
</pallas_src>

<mosaic_0001>
module attributes {stable_mosaic.version = 11 : i64} {
  func.func @_seg_head_kernel(%arg0: i32, %arg1: memref<2x432x512xbf16, #tpu.memory_space<vmem>>, %arg2: memref<32x432xbf16, #tpu.memory_space<vmem>>, %arg3: memref<1x32xf32, #tpu.memory_space<vmem>>, %arg4: memref<1x1xf32, #tpu.memory_space<vmem>>, %arg5: memref<2x1x512xf32, #tpu.memory_space<vmem>>) attributes {dimension_semantics = [#tpu.dimension_semantics<parallel>], iteration_bounds = array<i64: 1>, scalar_prefetch = 0 : i64, scratch_operands = 0 : i64, tpu.core_type = #tpu.core_type<tc>, window_params = [{transform_indices = @transform_0, window_bounds = array<i64: 2, 432, 512>}, {pipeline_mode = #tpu.pipeline_mode<synchronous>, transform_indices = @transform_1, window_bounds = array<i64: 32, 432>}, {pipeline_mode = #tpu.pipeline_mode<synchronous>, transform_indices = @transform_2, window_bounds = array<i64: 1, 32>}, {pipeline_mode = #tpu.pipeline_mode<synchronous>, transform_indices = @transform_3, window_bounds = array<i64: 1, 1>}, {transform_indices = @transform_4, window_bounds = array<i64: 2, 1, 512>}]} {
    %c0 = arith.constant 0 : index
    %c0_0 = arith.constant 0 : index
    %0 = vector.load %arg2[%c0, %c0_0] : memref<32x432xbf16, #tpu.memory_space<vmem>>, vector<32x432xbf16>
    %c0_1 = arith.constant 0 : index
    %c0_2 = arith.constant 0 : index
    %1 = vector.load %arg3[%c0_1, %c0_2] : memref<1x32xf32, #tpu.memory_space<vmem>>, vector<1x32xf32>
    %c0_3 = arith.constant 0 : index
    %c0_4 = arith.constant 0 : index
    %2 = vector.load %arg4[%c0_3, %c0_4] : memref<1x1xf32, #tpu.memory_space<vmem>>, vector<1x1xf32>
    %c0_5 = arith.constant 0 : index
    %c0_6 = arith.constant 0 : index
    %c0_7 = arith.constant 0 : index
    %3 = vector.load %arg1[%c0_5, %c0_6, %c0_7] : memref<2x432x512xbf16, #tpu.memory_space<vmem>>, vector<1x432x512xbf16>
    %4 = vector.shape_cast %3 : vector<1x432x512xbf16> to vector<432x512xbf16>
    %cst = arith.constant dense<0.000000e+00> : vector<32x512xf32>
    %5 = tpu.matmul %0, %4, %cst {dimension_numbers = #tpu.dot_dimension_numbers<[1], [0], [0], [1], [0, 0, 1, 1], [], []>} : vector<32x432xbf16>, vector<432x512xbf16>, vector<32x512xf32> -> vector<32x512xf32>
    %cst_8 = arith.constant dense<0.000000e+00> : vector<32xf32>
    %6 = vector.multi_reduction <add>, %5, %cst_8 [1] : vector<32x512xf32> to vector<32xf32>
    %7 = vector.shape_cast %6 : vector<32xf32> to vector<32x1xf32>
    %cst_9 = arith.constant 0.001953125 : f32
    %8 = vector.broadcast %cst_9 : f32 to vector<32x1xf32>
    %9 = arith.mulf %7, %8 : vector<32x1xf32>
    %10 = arith.mulf %5, %5 : vector<32x512xf32>
    %cst_10 = arith.constant dense<0.000000e+00> : vector<32xf32>
    %11 = vector.multi_reduction <add>, %10, %cst_10 [1] : vector<32x512xf32> to vector<32xf32>
    %12 = vector.shape_cast %11 : vector<32xf32> to vector<32x1xf32>
    %cst_11 = arith.constant 0.001953125 : f32
    %13 = vector.broadcast %cst_11 : f32 to vector<32x1xf32>
    %14 = arith.mulf %12, %13 : vector<32x1xf32>
    %15 = arith.mulf %9, %9 : vector<32x1xf32>
    %16 = arith.subf %14, %15 : vector<32x1xf32>
    %cst_12 = arith.constant 0.000000e+00 : f32
    %17 = vector.broadcast %cst_12 : f32 to vector<32x1xf32>
    %18 = arith.maximumf %16, %17 : vector<32x1xf32>
    %19 = vector.broadcast %9 : vector<32x1xf32> to vector<32x512xf32>
    %20 = arith.subf %5, %19 : vector<32x512xf32>
    %cst_13 = arith.constant 9.99999974E-6 : f32
    %21 = vector.broadcast %cst_13 : f32 to vector<32x1xf32>
    %22 = arith.addf %18, %21 : vector<32x1xf32>
    %23 = math.rsqrt %22 : vector<32x1xf32>
    %24 = vector.broadcast %23 : vector<32x1xf32> to vector<32x512xf32>
    %25 = arith.mulf %20, %24 : vector<32x512xf32>
    %cst_14 = arith.constant 0.000000e+00 : f32
    %26 = vector.broadcast %cst_14 : f32 to vector<32x512xf32>
    %27 = arith.maximumf %25, %26 : vector<32x512xf32>
    %cst_15 = arith.constant dense<0.000000e+00> : vector<1x512xf32>
    %28 = tpu.matmul %1, %27, %cst_15 {dimension_numbers = #tpu.dot_dimension_numbers<[1], [0], [0], [1], [0, 0, 1, 1], [], []>} : vector<1x32xf32>, vector<32x512xf32>, vector<1x512xf32> -> vector<1x512xf32>
    %29 = vector.broadcast %2 : vector<1x1xf32> to vector<1x512xf32>
    %30 = arith.addf %28, %29 : vector<1x512xf32>
    %31 = arith.negf %30 : vector<1x512xf32>
    %32 = math.exp %31 : vector<1x512xf32>
    %cst_16 = arith.constant 1.000000e+00 : f32
    %33 = vector.broadcast %cst_16 : f32 to vector<1x512xf32>
    %34 = arith.addf %33, %32 : vector<1x512xf32>
    %35 = arith.divf %33, %34 : vector<1x512xf32>
    %c0_17 = arith.constant 0 : index
    %c0_18 = arith.constant 0 : index
    %c0_19 = arith.constant 0 : index
    %36 = vector.load %arg5[%c0_17, %c0_18, %c0_19] : memref<2x1x512xf32, #tpu.memory_space<vmem>>, vector<1x1x512xf32>
    %37 = vector.shape_cast %36 : vector<1x1x512xf32> to vector<1x512xf32>
    %38 = vector.shape_cast %35 : vector<1x512xf32> to vector<1x1x512xf32>
    tpu.vector_store %arg5[%c0_17, %c0_18, %c0_19], %38 {strides = array<i32>} : memref<2x1x512xf32, #tpu.memory_space<vmem>>, vector<1x1x512xf32>,
    %c1 = arith.constant 1 : index
    %c0_20 = arith.constant 0 : index
    %c0_21 = arith.constant 0 : index
    %39 = vector.load %arg1[%c1, %c0_20, %c0_21] : memref<2x432x512xbf16, #tpu.memory_space<vmem>>, vector<1x432x512xbf16>
    %40 = vector.shape_cast %39 : vector<1x432x512xbf16> to vector<432x512xbf16>
    %cst_22 = arith.constant dense<0.000000e+00> : vector<32x512xf32>
    %41 = tpu.matmul %0, %40, %cst_22 {dimension_numbers = #tpu.dot_dimension_numbers<[1], [0], [0], [1], [0, 0, 1, 1], [], []>} : vector<32x432xbf16>, vector<432x512xbf16>, vector<32x512xf32> -> vector<32x512xf32>
    %cst_23 = arith.constant dense<0.000000e+00> : vector<32xf32>
    %42 = vector.multi_reduction <add>, %41, %cst_23 [1] : vector<32x512xf32> to vector<32xf32>
    %43 = vector.shape_cast %42 : vector<32xf32> to vector<32x1xf32>
    %cst_24 = arith.constant 0.001953125 : f32
    %44 = vector.broadcast %cst_24 : f32 to vector<32x1xf32>
    %45 = arith.mulf %43, %44 : vector<32x1xf32>
    %46 = arith.mulf %41, %41 : vector<32x512xf32>
    %cst_25 = arith.constant dense<0.000000e+00> : vector<32xf32>
    %47 = vector.multi_reduction <add>, %46, %cst_25 [1] : vector<32x512xf32> to vector<32xf32>
    %48 = vector.shape_cast %47 : vector<32xf32> to vector<32x1xf32>
    %cst_26 = arith.constant 0.001953125 : f32
    %49 = vector.broadcast %cst_26 : f32 to vector<32x1xf32>
    %50 = arith.mulf %48, %49 : vector<32x1xf32>
    %51 = arith.mulf %45, %45 : vector<32x1xf32>
    %52 = arith.subf %50, %51 : vector<32x1xf32>
    %cst_27 = arith.constant 0.000000e+00 : f32
    %53 = vector.broadcast %cst_27 : f32 to vector<32x1xf32>
    %54 = arith.maximumf %52, %53 : vector<32x1xf32>
    %55 = vector.broadcast %45 : vector<32x1xf32> to vector<32x512xf32>
    %56 = arith.subf %41, %55 : vector<32x512xf32>
    %cst_28 = arith.constant 9.99999974E-6 : f32
    %57 = vector.broadcast %cst_28 : f32 to vector<32x1xf32>
    %58 = arith.addf %54, %57 : vector<32x1xf32>
    %59 = math.rsqrt %58 : vector<32x1xf32>
    %60 = vector.broadcast %59 : vector<32x1xf32> to vector<32x512xf32>
    %61 = arith.mulf %56, %60 : vector<32x512xf32>
    %cst_29 = arith.constant 0.000000e+00 : f32
    %62 = vector.broadcast %cst_29 : f32 to vector<32x512xf32>
    %63 = arith.maximumf %61, %62 : vector<32x512xf32>
    %cst_30 = arith.constant dense<0.000000e+00> : vector<1x512xf32>
    %64 = tpu.matmul %1, %63, %cst_30 {dimension_numbers = #tpu.dot_dimension_numbers<[1], [0], [0], [1], [0, 0, 1, 1], [], []>} : vector<1x32xf32>, vector<32x512xf32>, vector<1x512xf32> -> vector<1x512xf32>
    %65 = vector.broadcast %2 : vector<1x1xf32> to vector<1x512xf32>
    %66 = arith.addf %64, %65 : vector<1x512xf32>
    %67 = arith.negf %66 : vector<1x512xf32>
    %68 = math.exp %67 : vector<1x512xf32>
    %cst_31 = arith.constant 1.000000e+00 : f32
    %69 = vector.broadcast %cst_31 : f32 to vector<1x512xf32>
    %70 = arith.addf %69, %68 : vector<1x512xf32>
    %71 = arith.divf %69, %70 : vector<1x512xf32>
    %c1_32 = arith.constant 1 : index
    %c0_33 = arith.constant 0 : index
    %c0_34 = arith.constant 0 : index
    %72 = vector.load %arg5[%c1_32, %c0_33, %c0_34] : memref<2x1x512xf32, #tpu.memory_space<vmem>>, vector<1x1x512xf32>
    %73 = vector.shape_cast %72 : vector<1x1x512xf32> to vector<1x512xf32>
    %74 = vector.shape_cast %71 : vector<1x512xf32> to vector<1x1x512xf32>
    tpu.vector_store %arg5[%c1_32, %c0_33, %c0_34], %74 {strides = array<i32>} : memref<2x1x512xf32, #tpu.memory_space<vmem>>, vector<1x1x512xf32>,
    return
  }
  func.func @transform_0(%arg0: i32) -> (i32, i32, i32) {
    %c0_i32 = arith.constant 0 : i32
    %c0_i32_0 = arith.constant 0 : i32
    %c0_i32_1 = arith.constant 0 : i32
    return %arg0, %c0_i32, %c0_i32_0 : i32, i32, i32
  }
  func.func @transform_1(%arg0: i32) -> (i32, i32) {
    %c0_i32 = arith.constant 0 : i32
    %c0_i32_0 = arith.constant 0 : i32
    %c0_i32_1 = arith.constant 0 : i32
    return %c0_i32, %c0_i32_0 : i32, i32
  }
  func.func @transform_2(%arg0: i32) -> (i32, i32) {
    %c0_i32 = arith.constant 0 : i32
    %c0_i32_0 = arith.constant 0 : i32
    %c0_i32_1 = arith.constant 0 : i32
    return %c0_i32, %c0_i32_0 : i32, i32
  }
  func.func @transform_3(%arg0: i32) -> (i32, i32) {
    %c0_i32 = arith.constant 0 : i32
    %c0_i32_0 = arith.constant 0 : i32
    %c0_i32_1 = arith.constant 0 : i32
    return %c0_i32, %c0_i32_0 : i32, i32
  }
  func.func @transform_4(%arg0: i32) -> (i32, i32, i32) {
    %c0_i32 = arith.constant 0 : i32
    %c0_i32_0 = arith.constant 0 : i32
    %c0_i32_1 = arith.constant 0 : i32
    return %arg0, %c0_i32, %c0_i32_0 : i32, i32, i32
  }
}

</mosaic_0001>

<llo_original>
// kernel: tpu_custom_call.1
$region0: #{tpu_custom_call.1}
  #allocation0 [shape = 'u32[]', space=smem, size = 0x4, offset = 0x4, fixed_abs, tag = 'smem constant byte address 0x4 - core index']
  #allocation1 [shape = 'u32[144,128]{1,0:T(1,128)}', space=vmem, size = 0x12000, scoped, tag = 'internal scratch']
  #allocation2 [shape = 'f32[1,1]{1,0:T(1,128)S(1)}', space=vmem, size = 0x200, scoped, tag = 'scoped memory for tpu_custom_call.1']
  %s0 = inlined_call_operand.hbm [shape: bf16[2,432,512], index: 0, kind: input, shape index: {}]
  %s1 = inlined_call_operand.hbm [shape: bf16[32,432], index: 1, kind: input, shape index: {}]
  %s2 = inlined_call_operand.vmem [shape: f32[1,32], index: 2, kind: input, shape index: {}]
  %s3 = inlined_call_operand.<no memory space> [shape: f32[1,1], index: 3, kind: input, shape index: {}]
  %s4 = inlined_call_operand.hbm [shape: f32[2,1,512], index: 4, kind: output, shape index: {}]
  %s5 = sld [smem:[#allocation0]]
  $region34: #{tpu_custom_call.1} parent=0
    _
  %s7 = ssub.s32 1, %s5
  %s8 = scalar_select 0, %s7, %s5
  %v9 = vstv %s3
  %10 = vst [vmem:[#allocation2] sm:$0x1] %v9
  $region1: #{tpu_custom_call.1} parent=0
    #allocation3 [shape = 'u8[884736]{0}', space=vmem, size = 0xd8000, scoped, tag = 'input window, operand 0, single buffered']
    #allocation4 [shape = 's32[1]{0}', space=sflag, size = 0x4, scoped, tag = 'scoped memory for tpu_custom_call.1']
    #allocation5 [shape = 's32[1]{0}', space=sflag, size = 0x4, scoped, tag = 'scoped memory for tpu_custom_call.1']
    #allocation6 [shape = 'u8[32768]{0}', space=vmem, size = 0x8000, scoped, tag = 'input window, operand 1, single buffered']
    #allocation7 [shape = 's32[1]{0}', space=sflag, size = 0x4, scoped, tag = 'scoped memory for tpu_custom_call.1']
    #allocation8 [shape = 'u8[4096]{0}', space=vmem, size = 0x1000, scoped, tag = 'output window, operand 0, single buffered']
    %11 = vsyncpa [#allocation4], 0
    %12 = vsyncpa [#allocation7], 0
    %13 = vsyncpa [#allocation5], 0
    // Predicated region
    $region2: #{tpu_custom_call.1} parent=1 // pred_check
      _
    $region3: #{tpu_custom_call.1} parent=1 // pred_check_branch
      %15 = sbr.rel (0) target = $region5
    $region4: #{tpu_custom_call.1} parent=1 // pred_region
      %s17 = ssub.s32 27648, 27648
      %18 = vsyncadd [#allocation4], %s17
      %s19 = sshll.u32 [#allocation3], 4
      %s20 = int_to_ptr.vmem [resolvable:$true] %s19
      %25 = dma.hbm_to_vmem [thread:$0]  %s0, 27648, %s20, [#allocation4], 256, 256, 16
    $region5: #{tpu_custom_call.1} parent=1 // pred_fallthru
      _
    // Predicated region
    $region6: #{tpu_custom_call.1} parent=1 // pred_check
      _
    $region7: #{tpu_custom_call.1} parent=1 // pred_check_branch
      %27 = sbr.rel (0) target = $region9
    $region8: #{tpu_custom_call.1} parent=1 // pred_region
      %s29 = ssub.s32 1024, 1024
      %30 = vsyncadd [#allocation7], %s29
      %s31 = sshll.u32 [#allocation6], 4
      %s32 = int_to_ptr.vmem [resolvable:$true] %s31
      %37 = dma.hbm_to_vmem [thread:$0]  %s1, 1024, %s32, [#allocation7], 256, 256, 16
    $region9: #{tpu_custom_call.1} parent=1 // pred_fallthru
      _
    // Predicated region
    $region10: #{tpu_custom_call.1} parent=1 // pred_check
      _
    $region11: #{tpu_custom_call.1} parent=1 // pred_check_branch
      %39 = sbr.rel (0) target = $region13
    $region12: #{tpu_custom_call.1} parent=1 // pred_region
      _
    $region13: #{tpu_custom_call.1} parent=1 // pred_fallthru
      _
    // Predicated region
    $region14: #{tpu_custom_call.1} parent=1 // pred_check
      _
    $region15: #{tpu_custom_call.1} parent=1 // pred_check_branch
      %41 = sbr.rel (0) target = $region17
    $region16: #{tpu_custom_call.1} parent=1 // pred_region
      _
    $region17: #{tpu_custom_call.1} parent=1 // pred_fallthru
      _
    // Predicated region
    $region18: #{tpu_custom_call.1} parent=1 // pred_check
      _
    $region19: #{tpu_custom_call.1} parent=1 // pred_check_branch
      %43 = sbr.rel (0) target = $region21
    $region20: #{tpu_custom_call.1} parent=1 // pred_region
      %44 = dma.done [#allocation4], 27648
    $region21: #{tpu_custom_call.1} parent=1 // pred_fallthru
      _
    // Predicated region
    $region22: #{tpu_custom_call.1} parent=1 // pred_check
      _
    $region23: #{tpu_custom_call.1} parent=1 // pred_check_branch
      %46 = sbr.rel (0) target = $region25
    $region24: #{tpu_custom_call.1} parent=1 // pred_region
      %47 = dma.done [#allocation7], 1024
    $region25: #{tpu_custom_call.1} parent=1 // pred_fallthru
      _
    %v49 = vld [vmem:[#allocation6] sm:$0xff]
    %v50 = vld [vmem:[#allocation6 + $0x8] sm:$0xff]
    %v51 = vld [vmem:[#allocation6 + $0x10] sm:$0xff]
    %v52 = vld [vmem:[#allocation6 + $0x18] sm:$0xff]
    %v53 = vld [vmem:[#allocation6 + $0x20] sm:$0xff]
    %v54 = vld [vmem:[#allocation6 + $0x28] sm:$0xff]
    %v55 = vld [vmem:[#allocation6 + $0x30] sm:$0xff]
    %v56 = vld [vmem:[#allocation6 + $0x38] sm:$0xff]
    %v57 = vld [vmem:[%s2] sm:$0x1]
    %v58 = vld [vmem:[#allocation2] sm:$0x1]
    %v59 = vld [vmem:[#allocation3] sm:$0xff]
    %v60 = vld [vmem:[#allocation3 + $0x8] sm:$0xff]
    %v61 = vld [vmem:[#allocation3 + $0x10] sm:$0xff]
    %v62 = vld [vmem:[#allocation3 + $0x18] sm:$0xff]
    %v63 = vld [vmem:[#allocation3 + $0x20] sm:$0xff]
    %v64 = vld [vmem:[#allocation3 + $0x28] sm:$0xff]
    %v65 = vld [vmem:[#allocation3 + $0x30] sm:$0xff]
    %v66 = vld [vmem:[#allocation3 + $0x38] sm:$0xff]
    %v67 = vld [vmem:[#allocation3 + $0x40] sm:$0xff]
    %v68 = vld [vmem:[#allocation3 + $0x48] sm:$0xff]
    %v69 = vld [vmem:[#allocation3 + $0x50] sm:$0xff]
    %v70 = vld [vmem:[#allocation3 + $0x58] sm:$0xff]
    %v71 = vld [vmem:[#allocation3 + $0x60] sm:$0xff]
    %v72 = vld [vmem:[#allocation3 + $0x68] sm:$0xff]
    %v73 = vld [vmem:[#allocation3 + $0x70] sm:$0xff]
    %v74 = vld [vmem:[#allocation3 + $0x78] sm:$0xff]
    %v75 = vld [vmem:[#allocation3 + $0x80] sm:$0xff]
    %v76 = vld [vmem:[#allocation3 + $0x88] sm:$0xff]
    %v77 = vld [vmem:[#allocation3 + $0x90] sm:$0xff]
    %v78 = vld [vmem:[#allocation3 + $0x98] sm:$0xff]
    %v79 = vld [vmem:[#allocation3 + $0xa0] sm:$0xff]
    %v80 = vld [vmem:[#allocation3 + $0xa8] sm:$0xff]
    %v81 = vld [vmem:[#allocation3 + $0xb0] sm:$0xff]
    %v82 = vld [vmem:[#allocation3 + $0xb8] sm:$0xff]
    %v83 = vld [vmem:[#allocation3 + $0xc0] sm:$0xff]
    %v84 = vld [vmem:[#allocation3 + $0xc8] sm:$0xff]
    %v85 = vld [vmem:[#allocation3 + $0xd0] sm:$0xff]
    %v86 = vld [vmem:[#allocation3 + $0xd8] sm:$0xff]
    %v87 = vld [vmem:[#allocation3 + $0xe0] sm:$0xff]
    %v88 = vld [vmem:[#allocation3 + $0xe8] sm:$0xff]
    %v89 = vld [vmem:[#allocation3 + $0xf0] sm:$0xff]
    %v90 = vld [vmem:[#allocation3 + $0xf8] sm:$0xff]
    %v91 = vld [vmem:[#allocation3 + $0x100] sm:$0xff]
    %v92 = vld [vmem:[#allocation3 + $0x108] sm:$0xff]
    %v93 = vld [vmem:[#allocation3 + $0x110] sm:$0xff]
    %v94 = vld [vmem:[#allocation3 + $0x118] sm:$0xff]
    %v95 = vld [vmem:[#allocation3 + $0x120] sm:$0xff]
    %v96 = vld [vmem:[#allocation3 + $0x128] sm:$0xff]
    %v97 = vld [vmem:[#allocation3 + $0x130] sm:$0xff]
    %v98 = vld [vmem:[#allocation3 + $0x138] sm:$0xff]
    %v99 = vld [vmem:[#allocation3 + $0x140] sm:$0xff]
    %v100 = vld [vmem:[#allocation3 + $0x148] sm:$0xff]
    %v101 = vld [vmem:[#allocation3 + $0x150] sm:$0xff]
    %v102 = vld [vmem:[#allocation3 + $0x158] sm:$0xff]
    %v103 = vld [vmem:[#allocation3 + $0x160] sm:$0xff]
    %v104 = vld [vmem:[#allocation3 + $0x168] sm:$0xff]
    %v105 = vld [vmem:[#allocation3 + $0x170] sm:$0xff]
    %v106 = vld [vmem:[#allocation3 + $0x178] sm:$0xff]
    %v107 = vld [vmem:[#allocation3 + $0x180] sm:$0xff]
    %v108 = vld [vmem:[#allocation3 + $0x188] sm:$0xff]
    %v109 = vld [vmem:[#allocation3 + $0x190] sm:$0xff]
    %v110 = vld [vmem:[#allocation3 + $0x198] sm:$0xff]
    %v111 = vld [vmem:[#allocation3 + $0x1a0] sm:$0xff]
    %v112 = vld [vmem:[#allocation3 + $0x1a8] sm:$0xff]
    %v113 = vld [vmem:[#allocation3 + $0x1b0] sm:$0xff]
    %v114 = vld [vmem:[#allocation3 + $0x1b8] sm:$0xff]
    %v115 = vld [vmem:[#allocation3 + $0x1c0] sm:$0xff]
    %v116 = vld [vmem:[#allocation3 + $0x1c8] sm:$0xff]
    %v117 = vld [vmem:[#allocation3 + $0x1d0] sm:$0xff]
    %v118 = vld [vmem:[#allocation3 + $0x1d8] sm:$0xff]
    %v119 = vld [vmem:[#allocation3 + $0x1e0] sm:$0xff]
    %v120 = vld [vmem:[#allocation3 + $0x1e8] sm:$0xff]
    %v121 = vld [vmem:[#allocation3 + $0x1f0] sm:$0xff]
    %v122 = vld [vmem:[#allocation3 + $0x1f8] sm:$0xff]
    %v123 = vld [vmem:[#allocation3 + $0x200] sm:$0xff]
    %v124 = vld [vmem:[#allocation3 + $0x208] sm:$0xff]
    %v125 = vld [vmem:[#allocation3 + $0x210] sm:$0xff]
    %v126 = vld [vmem:[#allocation3 + $0x218] sm:$0xff]
    %v127 = vld [vmem:[#allocation3 + $0x220] sm:$0xff]
    %v128 = vld [vmem:[#allocation3 + $0x228] sm:$0xff]
    %v129 = vld [vmem:[#allocation3 + $0x230] sm:$0xff]
    %v130 = vld [vmem:[#allocation3 + $0x238] sm:$0xff]
    %v131 = vld [vmem:[#allocation3 + $0x240] sm:$0xff]
    %v132 = vld [vmem:[#allocation3 + $0x248] sm:$0xff]
    %v133 = vld [vmem:[#allocation3 + $0x250] sm:$0xff]
    %v134 = vld [vmem:[#allocation3 + $0x258] sm:$0xff]
    %v135 = vld [vmem:[#allocation3 + $0x260] sm:$0xff]
    %v136 = vld [vmem:[#allocation3 + $0x268] sm:$0xff]
    %v137 = vld [vmem:[#allocation3 + $0x270] sm:$0xff]
    %v138 = vld [vmem:[#allocation3 + $0x278] sm:$0xff]
    %v139 = vld [vmem:[#allocation3 + $0x280] sm:$0xff]
    %v140 = vld [vmem:[#allocation3 + $0x288] sm:$0xff]
    %v141 = vld [vmem:[#allocation3 + $0x290] sm:$0xff]
    %v142 = vld [vmem:[#allocation3 + $0x298] sm:$0xff]
    %v143 = vld [vmem:[#allocation3 + $0x2a0] sm:$0xff]
    %v144 = vld [vmem:[#allocation3 + $0x2a8] sm:$0xff]
    %v145 = vld [vmem:[#allocation3 + $0x2b0] sm:$0xff]
    %v146 = vld [vmem:[#allocation3 + $0x2b8] sm:$0xff]
    %v147 = vld [vmem:[#allocation3 + $0x2c0] sm:$0xff]
    %v148 = vld [vmem:[#allocation3 + $0x2c8] sm:$0xff]
    %v149 = vld [vmem:[#allocation3 + $0x2d0] sm:$0xff]
    %v150 = vld [vmem:[#allocation3 + $0x2d8] sm:$0xff]
    %v151 = vld [vmem:[#allocation3 + $0x2e0] sm:$0xff]
    %v152 = vld [vmem:[#allocation3 + $0x2e8] sm:$0xff]
    %v153 = vld [vmem:[#allocation3 + $0x2f0] sm:$0xff]
    %v154 = vld [vmem:[#allocation3 + $0x2f8] sm:$0xff]
    %v155 = vld [vmem:[#allocation3 + $0x300] sm:$0xff]
    %v156 = vld [vmem:[#allocation3 + $0x308] sm:$0xff]
    %v157 = vld [vmem:[#allocation3 + $0x310] sm:$0xff]
    %v158 = vld [vmem:[#allocation3 + $0x318] sm:$0xff]
    %v159 = vld [vmem:[#allocation3 + $0x320] sm:$0xff]
    %v160 = vld [vmem:[#allocation3 + $0x328] sm:$0xff]
    %v161 = vld [vmem:[#allocation3 + $0x330] sm:$0xff]
    %v162 = vld [vmem:[#allocation3 + $0x338] sm:$0xff]
    %v163 = vld [vmem:[#allocation3 + $0x340] sm:$0xff]
    %v164 = vld [vmem:[#allocation3 + $0x348] sm:$0xff]
    %v165 = vld [vmem:[#allocation3 + $0x350] sm:$0xff]
    %v166 = vld [vmem:[#allocation3 + $0x358] sm:$0xff]
    %v175 = vunpack.c.l.b16 %v49
    %v176 = vunpack.c.h.b16 %v49
    %v177 = vunpack.c.l.b16 %v50
    %v178 = vunpack.c.h.b16 %v50
    %v179 = vunpack.c.l.b16 %v51
    %v180 = vunpack.c.h.b16 %v51
    %v181 = vunpack.c.l.b16 %v52
    %v182 = vunpack.c.h.b16 %v52
    %v183 = vunpack.c.l.b16 %v53
    %v184 = vunpack.c.h.b16 %v53
    %v185 = vunpack.c.l.b16 %v54
    %v186 = vunpack.c.h.b16 %v54
    %v187 = vunpack.c.l.b16 %v55
    %v188 = vunpack.c.h.b16 %v55
    %v189 = vunpack.c.l.b16 %v56
    %v190 = vunpack.c.h.b16 %v56
    %v191 = vpack.c.b16 %v179, %v175
    %v192 = vpack.c.b16 %v180, %v176
    %v193 = vpack.c.b16 %v181, %v177
    %v194 = vpack.c.b16 %v182, %v178
    %v195 = vpack.c.b16 %v187, %v183
    %v196 = vpack.c.b16 %v188, %v184
    %v197 = vpack.c.b16 %v189, %v185
    %v198 = vpack.c.b16 %v190, %v186
    %v313 = vunpack.c.l.b16 %v59
    %v314 = vunpack.c.h.b16 %v59
    %v315 = vunpack.c.l.b16 %v60
    %v316 = vunpack.c.h.b16 %v60
    %v317 = vunpack.c.l.b16 %v61
    %v318 = vunpack.c.h.b16 %v61
    %v319 = vunpack.c.l.b16 %v62
    %v320 = vunpack.c.h.b16 %v62
    %v321 = vunpack.c.l.b16 %v63
    %v322 = vunpack.c.h.b16 %v63
    %v323 = vunpack.c.l.b16 %v64
    %v324 = vunpack.c.h.b16 %v64
    %v325 = vunpack.c.l.b16 %v65
    %v326 = vunpack.c.h.b16 %v65
    %v327 = vunpack.c.l.b16 %v66
    %v328 = vunpack.c.h.b16 %v66
    %v329 = vunpack.c.l.b16 %v67
    %v330 = vunpack.c.h.b16 %v67
    %v331 = vunpack.c.l.b16 %v68
    %v332 = vunpack.c.h.b16 %v68
    %v333 = vunpack.c.l.b16 %v69
    %v334 = vunpack.c.h.b16 %v69
    %v335 = vunpack.c.l.b16 %v70
    %v336 = vunpack.c.h.b16 %v70
    %v337 = vunpack.c.l.b16 %v71
    %v338 = vunpack.c.h.b16 %v71
    %v339 = vunpack.c.l.b16 %v72
    %v340 = vunpack.c.h.b16 %v72
    %v341 = vunpack.c.l.b16 %v73
    %v342 = vunpack.c.h.b16 %v73
    %v343 = vunpack.c.l.b16 %v74
    %v344 = vunpack.c.h.b16 %v74
    %v345 = vunpack.c.l.b16 %v75
    %v346 = vunpack.c.h.b16 %v75
    %v347 = vunpack.c.l.b16 %v76
    %v348 = vunpack.c.h.b16 %v76
    %v349 = vunpack.c.l.b16 %v77
    %v350 = vunpack.c.h.b16 %v77
    %v351 = vunpack.c.l.b16 %v78
    %v352 = vunpack.c.h.b16 %v78
    %v353 = vunpack.c.l.b16 %v79
    %v354 = vunpack.c.h.b16 %v79
    %v355 = vunpack.c.l.b16 %v80
    %v356 = vunpack.c.h.b16 %v80
    %v357 = vunpack.c.l.b16 %v81
    %v358 = vunpack.c.h.b16 %v81
    %v359 = vunpack.c.l.b16 %v82
    %v360 = vunpack.c.h.b16 %v82
    %v361 = vunpack.c.l.b16 %v83
    %v362 = vunpack.c.h.b16 %v83
    %v363 = vunpack.c.l.b16 %v84
    %v364 = vunpack.c.h.b16 %v84
    %v365 = vunpack.c.l.b16 %v85
    %v366 = vunpack.c.h.b16 %v85
    %v367 = vunpack.c.l.b16 %v86
    %v368 = vunpack.c.h.b16 %v86
    %v369 = vunpack.c.l.b16 %v87
    %v370 = vunpack.c.h.b16 %v87
    %v371 = vunpack.c.l.b16 %v88
    %v372 = vunpack.c.h.b16 %v88
    %v373 = vunpack.c.l.b16 %v89
    %v374 = vunpack.c.h.b16 %v89
    %v375 = vunpack.c.l.b16 %v90
    %v376 = vunpack.c.h.b16 %v90
    %v377 = vunpack.c.l.b16 %v91
    %v378 = vunpack.c.h.b16 %v91
    %v379 = vunpack.c.l.b16 %v92
    %v380 = vunpack.c.h.b16 %v92
    %v381 = vunpack.c.l.b16 %v93
    %v382 = vunpack.c.h.b16 %v93
    %v383 = vunpack.c.l.b16 %v94
    %v384 = vunpack.c.h.b16 %v94
    %v385 = vunpack.c.l.b16 %v95
    %v386 = vunpack.c.h.b16 %v95
    %v387 = vunpack.c.l.b16 %v96
    %v388 = vunpack.c.h.b16 %v96
    %v389 = vunpack.c.l.b16 %v97
    %v390 = vunpack.c.h.b16 %v97
    %v391 = vunpack.c.l.b16 %v98
    %v392 = vunpack.c.h.b16 %v98
    %v393 = vunpack.c.l.b16 %v99
    %v394 = vunpack.c.h.b16 %v99
    %v395 = vunpack.c.l.b16 %v100
    %v396 = vunpack.c.h.b16 %v100
    %v397 = vunpack.c.l.b16 %v101
    %v398 = vunpack.c.h.b16 %v101
    %v399 = vunpack.c.l.b16 %v102
    %v400 = vunpack.c.h.b16 %v102
    %v401 = vunpack.c.l.b16 %v103
    %v402 = vunpack.c.h.b16 %v103
    %v403 = vunpack.c.l.b16 %v104
    %v404 = vunpack.c.h.b16 %v104
    %v405 = vunpack.c.l.b16 %v105
    %v406 = vunpack.c.h.b16 %v105
    %v407 = vunpack.c.l.b16 %v106
    %v408 = vunpack.c.h.b16 %v106
    %v409 = vunpack.c.l.b16 %v107
    %v410 = vunpack.c.h.b16 %v107
    %v411 = vunpack.c.l.b16 %v108
    %v412 = vunpack.c.h.b16 %v108
    %v413 = vunpack.c.l.b16 %v109
    %v414 = vunpack.c.h.b16 %v109
    %v415 = vunpack.c.l.b16 %v110
    %v416 = vunpack.c.h.b16 %v110
    %v417 = vunpack.c.l.b16 %v111
    %v418 = vunpack.c.h.b16 %v111
    %v419 = vunpack.c.l.b16 %v112
    %v420 = vunpack.c.h.b16 %v112
    %v421 = vunpack.c.l.b16 %v113
    %v422 = vunpack.c.h.b16 %v113
    %v423 = vunpack.c.l.b16 %v114
    %v424 = vunpack.c.h.b16 %v114
    %v425 = vunpack.c.l.b16 %v115
    %v426 = vunpack.c.h.b16 %v115
    %v427 = vunpack.c.l.b16 %v116
    %v428 = vunpack.c.h.b16 %v116
    %v429 = vunpack.c.l.b16 %v117
    %v430 = vunpack.c.h.b16 %v117
    %v431 = vunpack.c.l.b16 %v118
    %v432 = vunpack.c.h.b16 %v118
    %v433 = vunpack.c.l.b16 %v119
    %v434 = vunpack.c.h.b16 %v119
    %v435 = vunpack.c.l.b16 %v120
    %v436 = vunpack.c.h.b16 %v120
    %v437 = vunpack.c.l.b16 %v121
    %v438 = vunpack.c.h.b16 %v121
    %v439 = vunpack.c.l.b16 %v122
    %v440 = vunpack.c.h.b16 %v122
    %v441 = vunpack.c.l.b16 %v123
    %v442 = vunpack.c.h.b16 %v123
    %v443 = vunpack.c.l.b16 %v124
    %v444 = vunpack.c.h.b16 %v124
    %v445 = vunpack.c.l.b16 %v125
    %v446 = vunpack.c.h.b16 %v125
    %v447 = vunpack.c.l.b16 %v126
    %v448 = vunpack.c.h.b16 %v126
    %v449 = vunpack.c.l.b16 %v127
    %v450 = vunpack.c.h.b16 %v127
    %v451 = vunpack.c.l.b16 %v128
    %v452 = vunpack.c.h.b16 %v128
    %v453 = vunpack.c.l.b16 %v129
    %v454 = vunpack.c.h.b16 %v129
    %v455 = vunpack.c.l.b16 %v130
    %v456 = vunpack.c.h.b16 %v130
    %v457 = vunpack.c.l.b16 %v131
    %v458 = vunpack.c.h.b16 %v131
    %v459 = vunpack.c.l.b16 %v132
    %v460 = vunpack.c.h.b16 %v132
    %v461 = vunpack.c.l.b16 %v133
    %v462 = vunpack.c.h.b16 %v133
    %v463 = vunpack.c.l.b16 %v134
    %v464 = vunpack.c.h.b16 %v134
    %v465 = vunpack.c.l.b16 %v135
    %v466 = vunpack.c.h.b16 %v135
    %v467 = vunpack.c.l.b16 %v136
    %v468 = vunpack.c.h.b16 %v136
    %v469 = vunpack.c.l.b16 %v137
    %v470 = vunpack.c.h.b16 %v137
    %v471 = vunpack.c.l.b16 %v138
    %v472 = vunpack.c.h.b16 %v138
    %v473 = vunpack.c.l.b16 %v139
    %v474 = vunpack.c.h.b16 %v139
    %v475 = vunpack.c.l.b16 %v140
    %v476 = vunpack.c.h.b16 %v140
    %v477 = vunpack.c.l.b16 %v141
    %v478 = vunpack.c.h.b16 %v141
    %v479 = vunpack.c.l.b16 %v142
    %v480 = vunpack.c.h.b16 %v142
    %v481 = vunpack.c.l.b16 %v143
    %v482 = vunpack.c.h.b16 %v143
    %v483 = vunpack.c.l.b16 %v144
    %v484 = vunpack.c.h.b16 %v144
    %v485 = vunpack.c.l.b16 %v145
    %v486 = vunpack.c.h.b16 %v145
    %v487 = vunpack.c.l.b16 %v146
    %v488 = vunpack.c.h.b16 %v146
    %v489 = vunpack.c.l.b16 %v147
    %v490 = vunpack.c.h.b16 %v147
    %v491 = vunpack.c.l.b16 %v148
    %v492 = vunpack.c.h.b16 %v148
    %v493 = vunpack.c.l.b16 %v149
    %v494 = vunpack.c.h.b16 %v149
    %v495 = vunpack.c.l.b16 %v150
    %v496 = vunpack.c.h.b16 %v150
    %v497 = vunpack.c.l.b16 %v151
    %v498 = vunpack.c.h.b16 %v151
    %v499 = vunpack.c.l.b16 %v152
    %v500 = vunpack.c.h.b16 %v152
    %v501 = vunpack.c.l.b16 %v153
    %v502 = vunpack.c.h.b16 %v153
    %v503 = vunpack.c.l.b16 %v154
    %v504 = vunpack.c.h.b16 %v154
    %v505 = vunpack.c.l.b16 %v155
    %v506 = vunpack.c.h.b16 %v155
    %v507 = vunpack.c.l.b16 %v156
    %v508 = vunpack.c.h.b16 %v156
    %v509 = vunpack.c.l.b16 %v157
    %v510 = vunpack.c.h.b16 %v157
    %v511 = vunpack.c.l.b16 %v158
    %v512 = vunpack.c.h.b16 %v158
    %v513 = vunpack.c.l.b16 %v159
    %v514 = vunpack.c.h.b16 %v159
    %v515 = vunpack.c.l.b16 %v160
    %v516 = vunpack.c.h.b16 %v160
    %v517 = vunpack.c.l.b16 %v161
    %v518 = vunpack.c.h.b16 %v161
    %v519 = vunpack.c.l.b16 %v162
    %v520 = vunpack.c.h.b16 %v162
    %v521 = vunpack.c.l.b16 %v163
    %v522 = vunpack.c.h.b16 %v163
    %v523 = vunpack.c.l.b16 %v164
    %v524 = vunpack.c.h.b16 %v164
    %v525 = vunpack.c.l.b16 %v165
    %v526 = vunpack.c.h.b16 %v165
    %v527 = vunpack.c.l.b16 %v166
    %v528 = vunpack.c.h.b16 %v166
    %v529 = vpack.c.b16 %v317, %v313
    %v530 = vpack.c.b16 %v318, %v314
    %v531 = vpack.c.b16 %v319, %v315
    %v532 = vpack.c.b16 %v320, %v316
    %v533 = vpack.c.b16 %v325, %v321
    %v534 = vpack.c.b16 %v326, %v322
    %v535 = vpack.c.b16 %v327, %v323
    %v536 = vpack.c.b16 %v328, %v324
    %v537 = vpack.c.b16 %v333, %v329
    %v538 = vpack.c.b16 %v334, %v330
    %v539 = vpack.c.b16 %v335, %v331
    %v540 = vpack.c.b16 %v336, %v332
    %v541 = vpack.c.b16 %v341, %v337
    %v542 = vpack.c.b16 %v342, %v338
    %v543 = vpack.c.b16 %v343, %v339
    %v544 = vpack.c.b16 %v344, %v340
    %v545 = vpack.c.b16 %v349, %v345
    %v546 = vpack.c.b16 %v350, %v346
    %v547 = vpack.c.b16 %v351, %v347
    %v548 = vpack.c.b16 %v352, %v348
    %v549 = vpack.c.b16 %v357, %v353
    %v550 = vpack.c.b16 %v358, %v354
    %v551 = vpack.c.b16 %v359, %v355
    %v552 = vpack.c.b16 %v360, %v356
    %v553 = vpack.c.b16 %v365, %v361
    %v554 = vpack.c.b16 %v366, %v362
    %v555 = vpack.c.b16 %v367, %v363
    %v556 = vpack.c.b16 %v368, %v364
    %v557 = vpack.c.b16 %v373, %v369
    %v558 = vpack.c.b16 %v374, %v370
    %v559 = vpack.c.b16 %v375, %v371
    %v560 = vpack.c.b16 %v376, %v372
    %v561 = vpack.c.b16 %v381, %v377
    %v562 = vpack.c.b16 %v382, %v378
    %v563 = vpack.c.b16 %v383, %v379
    %v564 = vpack.c.b16 %v384, %v380
    %v565 = vpack.c.b16 %v389, %v385
    %v566 = vpack.c.b16 %v390, %v386
    %v567 = vpack.c.b16 %v391, %v387
    %v568 = vpack.c.b16 %v392, %v388
    %v569 = vpack.c.b16 %v397, %v393
    %v570 = vpack.c.b16 %v398, %v394
    %v571 = vpack.c.b16 %v399, %v395
    %v572 = vpack.c.b16 %v400, %v396
    %v573 = vpack.c.b16 %v405, %v401
    %v574 = vpack.c.b16 %v406, %v402
    %v575 = vpack.c.b16 %v407, %v403
    %v576 = vpack.c.b16 %v408, %v404
    %v577 = vpack.c.b16 %v413, %v409
    %v578 = vpack.c.b16 %v414, %v410
    %v579 = vpack.c.b16 %v415, %v411
    %v580 = vpack.c.b16 %v416, %v412
    %v581 = vpack.c.b16 %v421, %v417
    %v582 = vpack.c.b16 %v422, %v418
    %v583 = vpack.c.b16 %v423, %v419
    %v584 = vpack.c.b16 %v424, %v420
    %v585 = vpack.c.b16 %v429, %v425
    %v586 = vpack.c.b16 %v430, %v426
    %v587 = vpack.c.b16 %v431, %v427
    %v588 = vpack.c.b16 %v432, %v428
    %v589 = vpack.c.b16 %v437, %v433
    %v590 = vpack.c.b16 %v438, %v434
    %v591 = vpack.c.b16 %v439, %v435
    %v592 = vpack.c.b16 %v440, %v436
    %v593 = vpack.c.b16 %v445, %v441
    %v594 = vpack.c.b16 %v446, %v442
    %v595 = vpack.c.b16 %v447, %v443
    %v596 = vpack.c.b16 %v448, %v444
    %v597 = vpack.c.b16 %v453, %v449
    %v598 = vpack.c.b16 %v454, %v450
    %v599 = vpack.c.b16 %v455, %v451
    %v600 = vpack.c.b16 %v456, %v452
    %v601 = vpack.c.b16 %v461, %v457
    %v602 = vpack.c.b16 %v462, %v458
    %v603 = vpack.c.b16 %v463, %v459
    %v604 = vpack.c.b16 %v464, %v460
    %v605 = vpack.c.b16 %v469, %v465
    %v606 = vpack.c.b16 %v470, %v466
    %v607 = vpack.c.b16 %v471, %v467
    %v608 = vpack.c.b16 %v472, %v468
    %v609 = vpack.c.b16 %v477, %v473
    %v610 = vpack.c.b16 %v478, %v474
    %v611 = vpack.c.b16 %v479, %v475
    %v612 = vpack.c.b16 %v480, %v476
    %v613 = vpack.c.b16 %v485, %v481
    %v614 = vpack.c.b16 %v486, %v482
    %v615 = vpack.c.b16 %v487, %v483
    %v616 = vpack.c.b16 %v488, %v484
    %v617 = vpack.c.b16 %v493, %v489
    %v618 = vpack.c.b16 %v494, %v490
    %v619 = vpack.c.b16 %v495, %v491
    %v620 = vpack.c.b16 %v496, %v492
    %v621 = vpack.c.b16 %v501, %v497
    %v622 = vpack.c.b16 %v502, %v498
    %v623 = vpack.c.b16 %v503, %v499
    %v624 = vpack.c.b16 %v504, %v500
    %v625 = vpack.c.b16 %v509, %v505
    %v626 = vpack.c.b16 %v510, %v506
    %v627 = vpack.c.b16 %v511, %v507
    %v628 = vpack.c.b16 %v512, %v508
    %v629 = vpack.c.b16 %v517, %v513
    %v630 = vpack.c.b16 %v518, %v514
    %v631 = vpack.c.b16 %v519, %v515
    %v632 = vpack.c.b16 %v520, %v516
    %v633 = vpack.c.b16 %v525, %v521
    %v634 = vpack.c.b16 %v526, %v522
    %v635 = vpack.c.b16 %v527, %v523
    %v636 = vpack.c.b16 %v528, %v524
    %vm745 = vcmask 392192
    %v747 = vsel %vm745, %v194, 0
    %v750 = vsel %vm745, %v198, 0
    %752 = vmatprep.subr.bf16.mxu0 %v530
    %753 = vmatpush1.bf16.msra.mxu0 %v529
    %754 = vmatprep.subr.bf16.mxu0 %v534
    %755 = vmatpush1.bf16.msra.mxu0 %v533
    %756 = vmatprep.subr.bf16.mxu0 %v538
    %757 = vmatpush1.bf16.msra.mxu0 %v537
    %758 = vmatprep.subr.bf16.mxu0 %v542
    %759 = vmatpush1.bf16.msra.mxu0 %v541
    %760 = vmatprep.subr.bf16.mxu0 %v546
    %761 = vmatpush1.bf16.msra.mxu0 %v545
    %762 = vmatprep.subr.bf16.mxu0 %v550
    %763 = vmatpush1.bf16.msra.mxu0 %v549
    %764 = vmatprep.subr.bf16.mxu0 %v554
    %765 = vmatpush1.bf16.msra.mxu0 %v553
    %766 = vmatprep.subr.bf16.mxu0 %v558
    %767 = vmatpush1.bf16.msra.mxu0 %v557
    %768 = vmatprep.subr.bf16.mxu0 %v562
    %769 = vmatpush1.bf16.msra.mxu0 %v561
    %770 = vmatprep.subr.bf16.mxu0 %v566
    %771 = vmatpush1.bf16.msra.mxu0 %v565
    %772 = vmatprep.subr.bf16.mxu0 %v570
    %773 = vmatpush1.bf16.msra.mxu0 %v569
    %774 = vmatprep.subr.bf16.mxu0 %v574
    %775 = vmatpush1.bf16.msra.mxu0 %v573
    %776 = vmatprep.subr.bf16.mxu0 %v578
    %777 = vmatpush1.bf16.msra.mxu0 %v577
    %778 = vmatprep.subr.bf16.mxu0 %v582
    %779 = vmatpush1.bf16.msra.mxu0 %v581
    %780 = vmatprep.subr.bf16.mxu0 %v586
    %781 = vmatpush1.bf16.msra.mxu0 %v585
    %782 = vmatprep.subr.bf16.mxu0 %v590
    %783 = vmatpush1.bf16.msra.mxu0 %v589
    %784 = vmatprep.mubr.bf16.mxu0 %v192
    %785 = vmatmul.mubr.bf16.gmra.mrb[0].mxu0 %v191
    %v786 = vpop.f32.mrb[0].mxu0
    %v787 = vadd.f32 0.0, %v786
    %v788 = vpop.f32.mrb[0].mxu0
    %v789 = vadd.f32 0.0, %v788
    %v790 = vpop.f32.mrb[0].mxu0
    %v791 = vadd.f32 0.0, %v790
    %v792 = vpop.f32.mrb[0].mxu0
    %v793 = vadd.f32 0.0, %v792
    %794 = vmatprep.mubr.bf16.mxu0 %v196
    %795 = vmatmul.mubr.bf16.gmra.mrb[0].mxu0 %v195
    %v796 = vpop.f32.mrb[0].mxu0
    %v797 = vadd.f32 0.0, %v796
    %v798 = vpop.f32.mrb[0].mxu0
    %v799 = vadd.f32 0.0, %v798
    %v800 = vpop.f32.mrb[0].mxu0
    %v801 = vadd.f32 0.0, %v800
    %v802 = vpop.f32.mrb[0].mxu0
    %v803 = vadd.f32 0.0, %v802
    %804 = vdwg.mxu0
    %805 = vmatprep.subr.bf16.mxu0 %v594
    %806 = vmatpush1.bf16.msra.mxu0 %v593
    %807 = vmatprep.subr.bf16.mxu0 %v598
    %808 = vmatpush1.bf16.msra.mxu0 %v597
    %809 = vmatprep.subr.bf16.mxu0 %v602
    %810 = vmatpush1.bf16.msra.mxu0 %v601
    %811 = vmatprep.subr.bf16.mxu0 %v606
    %812 = vmatpush1.bf16.msra.mxu0 %v605
    %813 = vmatprep.subr.bf16.mxu0 %v610
    %814 = vmatpush1.bf16.msra.mxu0 %v609
    %815 = vmatprep.subr.bf16.mxu0 %v614
    %816 = vmatpush1.bf16.msra.mxu0 %v613
    %817 = vmatprep.subr.bf16.mxu0 %v618
    %818 = vmatpush1.bf16.msra.mxu0 %v617
    %819 = vmatprep.subr.bf16.mxu0 %v622
    %820 = vmatpush1.bf16.msra.mxu0 %v621
    %821 = vmatprep.subr.bf16.mxu0 %v626
    %822 = vmatpush1.bf16.msra.mxu0 %v625
    %823 = vmatprep.subr.bf16.mxu0 %v630
    %824 = vmatpush1.bf16.msra.mxu0 %v629
    %825 = vmatprep.subr.bf16.mxu0 %v634
    %826 = vmatpush1.bf16.msra.mxu0 %v633
    %827 = vmatprep.subr.bf16.mxu0 0
    %828 = vmatpush1.bf16.msra.mxu0 0
    %829 = vmatprep.subr.bf16.mxu0 0
    %830 = vmatpush1.bf16.msra.mxu0 0
    %831 = vmatprep.subr.bf16.mxu0 0
    %832 = vmatpush1.bf16.msra.mxu0 0
    %833 = vmatprep.subr.bf16.mxu0 0
    %834 = vmatpush1.bf16.msra.mxu0 0
    %835 = vmatprep.subr.bf16.mxu0 0
    %836 = vmatpush1.bf16.msra.mxu0 0
    %837 = vmatprep.mubr.bf16.mxu0 %v747
    %838 = vmatmul.mubr.bf16.gmra.mrb[0].mxu0 %v193
    %v839 = vpop.f32.mrb[0].mxu0
    %v840 = vadd.f32 %v787, %v839
    %v841 = vpop.f32.mrb[0].mxu0
    %v842 = vadd.f32 %v789, %v841
    %v843 = vpop.f32.mrb[0].mxu0
    %v844 = vadd.f32 %v791, %v843
    %v845 = vpop.f32.mrb[0].mxu0
    %v846 = vadd.f32 %v793, %v845
    %847 = vmatprep.mubr.bf16.mxu0 %v750
    %848 = vmatmul.mubr.bf16.gmra.mrb[0].mxu0 %v197
    %v849 = vpop.f32.mrb[0].mxu0
    %v850 = vadd.f32 %v797, %v849
    %v851 = vpop.f32.mrb[0].mxu0
    %v852 = vadd.f32 %v799, %v851
    %v853 = vpop.f32.mrb[0].mxu0
    %v854 = vadd.f32 %v801, %v853
    %v855 = vpop.f32.mrb[0].mxu0
    %v856 = vadd.f32 %v803, %v855
    %857 = vdwg.mxu0
    %858 = vmatprep.subr.bf16.mxu0 %v532
    %859 = vmatpush1.bf16.msra.mxu0 %v531
    %860 = vmatprep.subr.bf16.mxu0 %v536
    %861 = vmatpush1.bf16.msra.mxu0 %v535
    %862 = vmatprep.subr.bf16.mxu0 %v540
    %863 = vmatpush1.bf16.msra.mxu0 %v539
    %864 = vmatprep.subr.bf16.mxu0 %v544
    %865 = vmatpush1.bf16.msra.mxu0 %v543
    %866 = vmatprep.subr.bf16.mxu0 %v548
    %867 = vmatpush1.bf16.msra.mxu0 %v547
    %868 = vmatprep.subr.bf16.mxu0 %v552
    %869 = vmatpush1.bf16.msra.mxu0 %v551
    %870 = vmatprep.subr.bf16.mxu0 %v556
    %871 = vmatpush1.bf16.msra.mxu0 %v555
    %872 = vmatprep.subr.bf16.mxu0 %v560
    %873 = vmatpush1.bf16.msra.mxu0 %v559
    %874 = vmatprep.subr.bf16.mxu0 %v564
    %875 = vmatpush1.bf16.msra.mxu0 %v563
    %876 = vmatprep.subr.bf16.mxu0 %v568
    %877 = vmatpush1.bf16.msra.mxu0 %v567
    %878 = vmatprep.subr.bf16.mxu0 %v572
    %879 = vmatpush1.bf16.msra.mxu0 %v571
    %880 = vmatprep.subr.bf16.mxu0 %v576
    %881 = vmatpush1.bf16.msra.mxu0 %v575
    %882 = vmatprep.subr.bf16.mxu0 %v580
    %883 = vmatpush1.bf16.msra.mxu0 %v579
    %884 = vmatprep.subr.bf16.mxu0 %v584
    %885 = vmatpush1.bf16.msra.mxu0 %v583
    %886 = vmatprep.subr.bf16.mxu0 %v588
    %887 = vmatpush1.bf16.msra.mxu0 %v587
    %888 = vmatprep.subr.bf16.mxu0 %v592
    %889 = vmatpush1.bf16.msra.mxu0 %v591
    %890 = vmatprep.mubr.bf16.mxu0 %v192
    %891 = vmatmul.mubr.bf16.gmra.mrb[0].mxu0 %v191
    %v892 = vpop.f32.mrb[0].mxu0
    %v893 = vadd.f32 0.0, %v892
    %v894 = vpop.f32.mrb[0].mxu0
    %v895 = vadd.f32 0.0, %v894
    %v896 = vpop.f32.mrb[0].mxu0
    %v897 = vadd.f32 0.0, %v896
    %v898 = vpop.f32.mrb[0].mxu0
    %v899 = vadd.f32 0.0, %v898
    %900 = vmatprep.mubr.bf16.mxu0 %v196
    %901 = vmatmul.mubr.bf16.gmra.mrb[0].mxu0 %v195
    %v902 = vpop.f32.mrb[0].mxu0
    %v903 = vadd.f32 0.0, %v902
    %v904 = vpop.f32.mrb[0].mxu0
    %v905 = vadd.f32 0.0, %v904
    %v906 = vpop.f32.mrb[0].mxu0
    %v907 = vadd.f32 0.0, %v906
    %v908 = vpop.f32.mrb[0].mxu0
    %v909 = vadd.f32 0.0, %v908
    %910 = vdwg.mxu0
    %911 = vmatprep.subr.bf16.mxu0 %v596
    %912 = vmatpush1.bf16.msra.mxu0 %v595
    %913 = vmatprep.subr.bf16.mxu0 %v600
    %914 = vmatpush1.bf16.msra.mxu0 %v599
    %915 = vmatprep.subr.bf16.mxu0 %v604
    %916 = vmatpush1.bf16.msra.mxu0 %v603
    %917 = vmatprep.subr.bf16.mxu0 %v608
    %918 = vmatpush1.bf16.msra.mxu0 %v607
    %919 = vmatprep.subr.bf16.mxu0 %v612
    %920 = vmatpush1.bf16.msra.mxu0 %v611
    %921 = vmatprep.subr.bf16.mxu0 %v616
    %922 = vmatpush1.bf16.msra.mxu0 %v615
    %923 = vmatprep.subr.bf16.mxu0 %v620
    %924 = vmatpush1.bf16.msra.mxu0 %v619
    %925 = vmatprep.subr.bf16.mxu0 %v624
    %926 = vmatpush1.bf16.msra.mxu0 %v623
    %927 = vmatprep.subr.bf16.mxu0 %v628
    %928 = vmatpush1.bf16.msra.mxu0 %v627
    %929 = vmatprep.subr.bf16.mxu0 %v632
    %930 = vmatpush1.bf16.msra.mxu0 %v631
    %931 = vmatprep.subr.bf16.mxu0 %v636
    %932 = vmatpush1.bf16.msra.mxu0 %v635
    %933 = vmatprep.subr.bf16.mxu0 0
    %934 = vmatpush1.bf16.msra.mxu0 0
    %935 = vmatprep.subr.bf16.mxu0 0
    %936 = vmatpush1.bf16.msra.mxu0 0
    %937 = vmatprep.subr.bf16.mxu0 0
    %938 = vmatpush1.bf16.msra.mxu0 0
    %939 = vmatprep.subr.bf16.mxu0 0
    %940 = vmatpush1.bf16.msra.mxu0 0
    %941 = vmatprep.subr.bf16.mxu0 0
    %942 = vmatpush1.bf16.msra.mxu0 0
    %943 = vmatprep.mubr.bf16.mxu0 %v747
    %944 = vmatmul.mubr.bf16.gmra.mrb[0].mxu0 %v193
    %v945 = vpop.f32.mrb[0].mxu0
    %v946 = vadd.f32 %v893, %v945
    %v947 = vpop.f32.mrb[0].mxu0
    %v948 = vadd.f32 %v895, %v947
    %v949 = vpop.f32.mrb[0].mxu0
    %v950 = vadd.f32 %v897, %v949
    %v951 = vpop.f32.mrb[0].mxu0
    %v952 = vadd.f32 %v899, %v951
    %953 = vmatprep.mubr.bf16.mxu0 %v750
    %954 = vmatmul.mubr.bf16.gmra.mrb[0].mxu0 %v197
    %v955 = vpop.f32.mrb[0].mxu0
    %v956 = vadd.f32 %v903, %v955
    %v957 = vpop.f32.mrb[0].mxu0
    %v958 = vadd.f32 %v905, %v957
    %v959 = vpop.f32.mrb[0].mxu0
    %v960 = vadd.f32 %v907, %v959
    %v961 = vpop.f32.mrb[0].mxu0
    %v962 = vadd.f32 %v909, %v961
    %963 = vdwg.mxu0
    %v964 = vadd.f32 %v840, %v842
    %v965 = vadd.f32 %v964, %v946
    %v966 = vadd.f32 %v965, %v948
    %967 = vadd.xlane.f32.xlu0 %v966
    %v968 = vpop.xlane.xlu0 %967
    %v969 = vadd.f32 %v844, %v846
    %v970 = vadd.f32 %v969, %v950
    %v971 = vadd.f32 %v970, %v952
    %972 = vadd.xlane.f32.xlu0 %v971
    %v973 = vpop.xlane.xlu0 %972
    %v974 = vadd.f32 %v850, %v852
    %v975 = vadd.f32 %v974, %v956
    %v976 = vadd.f32 %v975, %v958
    %977 = vadd.xlane.f32.xlu0 %v976
    %v978 = vpop.xlane.xlu0 %977
    %v979 = vadd.f32 %v854, %v856
    %v980 = vadd.f32 %v979, %v960
    %v981 = vadd.f32 %v980, %v962
    %982 = vadd.xlane.f32.xlu0 %v981
    %v983 = vpop.xlane.xlu0 %982
    %v984 = vmul.f32 %v968, 0.001953125
    %v985 = vmul.f32 %v973, 0.001953125
    %v986 = vmul.f32 %v978, 0.001953125
    %v987 = vmul.f32 %v983, 0.001953125
    %v988 = vmul.f32 %v840, %v840
    %v989 = vmul.f32 %v842, %v842
    %v990 = vmul.f32 %v946, %v946
    %v991 = vmul.f32 %v948, %v948
    %v992 = vmul.f32 %v844, %v844
    %v993 = vmul.f32 %v846, %v846
    %v994 = vmul.f32 %v950, %v950
    %v995 = vmul.f32 %v952, %v952
    %v996 = vmul.f32 %v850, %v850
    %v997 = vmul.f32 %v852, %v852
    %v998 = vmul.f32 %v956, %v956
    %v999 = vmul.f32 %v958, %v958
    %v1000 = vmul.f32 %v854, %v854
    %v1001 = vmul.f32 %v856, %v856
    %v1002 = vmul.f32 %v960, %v960
    %v1003 = vmul.f32 %v962, %v962
    %v1004 = vadd.f32 %v988, %v989
    %v1005 = vadd.f32 %v1004, %v990
    %v1006 = vadd.f32 %v1005, %v991
    %1007 = vadd.xlane.f32.xlu0 %v1006
    %v1008 = vpop.xlane.xlu0 %1007
    %v1009 = vadd.f32 %v992, %v993
    %v1010 = vadd.f32 %v1009, %v994
    %v1011 = vadd.f32 %v1010, %v995
    %1012 = vadd.xlane.f32.xlu0 %v1011
    %v1013 = vpop.xlane.xlu0 %1012
    %v1014 = vadd.f32 %v996, %v997
    %v1015 = vadd.f32 %v1014, %v998
    %v1016 = vadd.f32 %v1015, %v999
    %1017 = vadd.xlane.f32.xlu0 %v1016
    %v1018 = vpop.xlane.xlu0 %1017
    %v1019 = vadd.f32 %v1000, %v1001
    %v1020 = vadd.f32 %v1019, %v1002
    %v1021 = vadd.f32 %v1020, %v1003
    %1022 = vadd.xlane.f32.xlu0 %v1021
    %v1023 = vpop.xlane.xlu0 %1022
    %v1024 = vmul.f32 %v1008, 0.001953125
    %v1025 = vmul.f32 %v1013, 0.001953125
    %v1026 = vmul.f32 %v1018, 0.001953125
    %v1027 = vmul.f32 %v1023, 0.001953125
    %v1028 = vmul.f32 %v984, %v984
    %v1029 = vmul.f32 %v985, %v985
    %v1030 = vmul.f32 %v986, %v986
    %v1031 = vmul.f32 %v987, %v987
    %v1032 = vsub.f32 %v1024, %v1028
    %v1033 = vsub.f32 %v1025, %v1029
    %v1034 = vsub.f32 %v1026, %v1030
    %v1035 = vsub.f32 %v1027, %v1031
    %v1036 = vmax.f32 %v1032, 0.0
    %v1037 = vmax.f32 %v1033, 0.0
    %v1038 = vmax.f32 %v1034, 0.0
    %v1039 = vmax.f32 %v1035, 0.0
    %v1040 = vsub.f32 %v840, %v984
    %v1041 = vsub.f32 %v842, %v984
    %v1042 = vsub.f32 %v946, %v984
    %v1043 = vsub.f32 %v948, %v984
    %v1044 = vsub.f32 %v844, %v985
    %v1045 = vsub.f32 %v846, %v985
    %v1046 = vsub.f32 %v950, %v985
    %v1047 = vsub.f32 %v952, %v985
    %v1048 = vsub.f32 %v850, %v986
    %v1049 = vsub.f32 %v852, %v986
    %v1050 = vsub.f32 %v956, %v986
    %v1051 = vsub.f32 %v958, %v986
    %v1052 = vsub.f32 %v854, %v987
    %v1053 = vsub.f32 %v856, %v987
    %v1054 = vsub.f32 %v960, %v987
    %v1055 = vsub.f32 %v962, %v987
    %v1056 = vadd.f32 %v1036, 1e-05
    %v1057 = vadd.f32 %v1037, 1e-05
    %v1058 = vadd.f32 %v1038, 1e-05
    %v1059 = vadd.f32 %v1039, 1e-05
    %v1060 = vrsqrt.pop %v1056
    %v1061 = vrsqrt.pop %v1057
    %v1062 = vrsqrt.pop %v1058
    %v1063 = vrsqrt.pop %v1059
    %v1064 = vmul.f32 %v1040, %v1060
    %v1065 = vmul.f32 %v1041, %v1060
    %v1066 = vmul.f32 %v1042, %v1060
    %v1067 = vmul.f32 %v1043, %v1060
    %v1068 = vmul.f32 %v1044, %v1061
    %v1069 = vmul.f32 %v1045, %v1061
    %v1070 = vmul.f32 %v1046, %v1061
    %v1071 = vmul.f32 %v1047, %v1061
    %v1072 = vmul.f32 %v1048, %v1062
    %v1073 = vmul.f32 %v1049, %v1062
    %v1074 = vmul.f32 %v1050, %v1062
    %v1075 = vmul.f32 %v1051, %v1062
    %v1076 = vmul.f32 %v1052, %v1063
    %v1077 = vmul.f32 %v1053, %v1063
    %v1078 = vmul.f32 %v1054, %v1063
    %v1079 = vmul.f32 %v1055, %v1063
    %v1080 = vmax.f32 %v1064, 0.0
    %v1081 = vmax.f32 %v1065, 0.0
    %v1082 = vmax.f32 %v1066, 0.0
    %v1083 = vmax.f32 %v1067, 0.0
    %v1084 = vmax.f32 %v1068, 0.0
    %v1085 = vmax.f32 %v1069, 0.0
    %v1086 = vmax.f32 %v1070, 0.0
    %v1087 = vmax.f32 %v1071, 0.0
    %v1088 = vmax.f32 %v1072, 0.0
    %v1089 = vmax.f32 %v1073, 0.0
    %v1090 = vmax.f32 %v1074, 0.0
    %v1091 = vmax.f32 %v1075, 0.0
    %v1092 = vmax.f32 %v1076, 0.0
    %v1093 = vmax.f32 %v1077, 0.0
    %v1094 = vmax.f32 %v1078, 0.0
    %v1095 = vmax.f32 %v1079, 0.0
    %1097 = vset.pattern.permute.xlu0 0
    %1098 = vperm.xlu0 %1097, %v58
    %v1099 = vpop.permute.xlu0 %1098
    %v1101 = vlaneseq
    %v1102 = vshrl.u32 %v1101, 7
    %v1103 = vsub.s32 0, %v1102
    %v1104 = vrot.slane %v1099, %v1103
    %vm1105 = vcmask 261120
    %v1107 = vsel %vm1105, %v57, 0
    %1109 = vmatprep.subr.mxu0 %v1081
    %1110 = vmatpush1.msra.mxu0 %v1080
    %1111 = vmatprep.subr.mxu0 %v1085
    %1112 = vmatpush1.msra.mxu0 %v1084
    %1113 = vmatprep.subr.mxu0 %v1089
    %1114 = vmatpush1.msra.mxu0 %v1088
    %1115 = vmatprep.subr.mxu0 %v1093
    %1116 = vmatpush1.msra.mxu0 %v1092
    %1117 = vmatprep.subr.mxu0 0.0
    %1118 = vmatpush1.msra.mxu0 0.0
    %1119 = vmatprep.subr.mxu0 0.0
    %1120 = vmatpush1.msra.mxu0 0.0
    %1121 = vmatprep.subr.mxu0 0.0
    %1122 = vmatpush1.msra.mxu0 0.0
    %1123 = vmatprep.subr.mxu0 0.0
    %1124 = vmatpush1.msra.mxu0 0.0
    %1125 = vmatprep.subr.mxu0 0.0
    %1126 = vmatpush1.msra.mxu0 0.0
    %1127 = vmatprep.subr.mxu0 0.0
    %1128 = vmatpush1.msra.mxu0 0.0
    %1129 = vmatprep.subr.mxu0 0.0
    %1130 = vmatpush1.msra.mxu0 0.0
    %1131 = vmatprep.subr.mxu0 0.0
    %1132 = vmatpush1.msra.mxu0 0.0
    %1133 = vmatprep.subr.mxu0 0.0
    %1134 = vmatpush1.msra.mxu0 0.0
    %1135 = vmatprep.subr.mxu0 0.0
    %1136 = vmatpush1.msra.mxu0 0.0
    %1137 = vmatprep.subr.mxu0 0.0
    %1138 = vmatpush1.msra.mxu0 0.0
    %1139 = vmatprep.subr.mxu0 0.0
    %1140 = vmatpush1.msra.mxu0 0.0
    %1141 = vmatprep.subr.mxu0 0.0
    %1142 = vmatpush1.msra.mxu0 0.0
    %1143 = vmatprep.subr.mxu0 0.0
    %1144 = vmatpush1.msra.mxu0 0.0
    %1145 = vmatprep.subr.mxu0 0.0
    %1146 = vmatpush1.msra.mxu0 0.0
    %1147 = vmatprep.subr.mxu0 0.0
    %1148 = vmatpush1.msra.mxu0 0.0
    %1149 = vmatprep.subr.mxu0 0.0
    %1150 = vmatpush1.msra.mxu0 0.0
    %1151 = vmatprep.subr.mxu0 0.0
    %1152 = vmatpush1.msra.mxu0 0.0
    %1153 = vmatprep.subr.mxu0 0.0
    %1154 = vmatpush1.msra.mxu0 0.0
    %1155 = vmatprep.subr.mxu0 0.0
    %1156 = vmatpush1.msra.mxu0 0.0
    %1157 = vmatprep.subr.mxu0 0.0
    %1158 = vmatpush1.msra.mxu0 0.0
    %1159 = vmatprep.subr.mxu0 0.0
    %1160 = vmatpush1.msra.mxu0 0.0
    %1161 = vmatprep.subr.mxu0 0.0
    %1162 = vmatpush1.msra.mxu0 0.0
    %1163 = vmatprep.subr.mxu0 0.0
    %1164 = vmatpush1.msra.mxu0 0.0
    %1165 = vmatprep.subr.mxu0 0.0
    %1166 = vmatpush1.msra.mxu0 0.0
    %1167 = vmatprep.subr.mxu0 0.0
    %1168 = vmatpush1.msra.mxu0 0.0
    %1169 = vmatprep.subr.mxu0 0.0
    %1170 = vmatpush1.msra.mxu0 0.0
    %1171 = vmatprep.subr.mxu0 0.0
    %1172 = vmatpush1.msra.mxu0 0.0
    %1173 = vmatprep.mubr.f32.mxu0 0.0
    %1174 = vmatmul.mubr.f32.gmra.mrb[0].mxu0 %v1107
    %v1175 = vpop.f32.mrb[0].mxu0
    %v1176 = vadd.f32 %v1104, %v1175
    %v1177 = vpop.f32.mrb[0].mxu0
    %v1178 = vadd.f32 %v1104, %v1177
    %1179 = vdwg.mxu0
    %1180 = vmatprep.subr.mxu0 %v1083
    %1181 = vmatpush1.msra.mxu0 %v1082
    %1182 = vmatprep.subr.mxu0 %v1087
    %1183 = vmatpush1.msra.mxu0 %v1086
    %1184 = vmatprep.subr.mxu0 %v1091
    %1185 = vmatpush1.msra.mxu0 %v1090
    %1186 = vmatprep.subr.mxu0 %v1095
    %1187 = vmatpush1.msra.mxu0 %v1094
    %1188 = vmatprep.subr.mxu0 0.0
    %1189 = vmatpush1.msra.mxu0 0.0
    %1190 = vmatprep.subr.mxu0 0.0
    %1191 = vmatpush1.msra.mxu0 0.0
    %1192 = vmatprep.subr.mxu0 0.0
    %1193 = vmatpush1.msra.mxu0 0.0
    %1194 = vmatprep.subr.mxu0 0.0
    %1195 = vmatpush1.msra.mxu0 0.0
    %1196 = vmatprep.subr.mxu0 0.0
    %1197 = vmatpush1.msra.mxu0 0.0
    %1198 = vmatprep.subr.mxu0 0.0
    %1199 = vmatpush1.msra.mxu0 0.0
    %1200 = vmatprep.subr.mxu0 0.0
    %1201 = vmatpush1.msra.mxu0 0.0
    %1202 = vmatprep.subr.mxu0 0.0
    %1203 = vmatpush1.msra.mxu0 0.0
    %1204 = vmatprep.subr.mxu0 0.0
    %1205 = vmatpush1.msra.mxu0 0.0
    %1206 = vmatprep.subr.mxu0 0.0
    %1207 = vmatpush1.msra.mxu0 0.0
    %1208 = vmatprep.subr.mxu0 0.0
    %1209 = vmatpush1.msra.mxu0 0.0
    %1210 = vmatprep.subr.mxu0 0.0
    %1211 = vmatpush1.msra.mxu0 0.0
    %1212 = vmatprep.subr.mxu0 0.0
    %1213 = vmatpush1.msra.mxu0 0.0
    %1214 = vmatprep.subr.mxu0 0.0
    %1215 = vmatpush1.msra.mxu0 0.0
    %1216 = vmatprep.subr.mxu0 0.0
    %1217 = vmatpush1.msra.mxu0 0.0
    %1218 = vmatprep.subr.mxu0 0.0
    %1219 = vmatpush1.msra.mxu0 0.0
    %1220 = vmatprep.subr.mxu0 0.0
    %1221 = vmatpush1.msra.mxu0 0.0
    %1222 = vmatprep.subr.mxu0 0.0
    %1223 = vmatpush1.msra.mxu0 0.0
    %1224 = vmatprep.subr.mxu0 0.0
    %1225 = vmatpush1.msra.mxu0 0.0
    %1226 = vmatprep.subr.mxu0 0.0
    %1227 = vmatpush1.msra.mxu0 0.0
    %1228 = vmatprep.subr.mxu0 0.0
    %1229 = vmatpush1.msra.mxu0 0.0
    %1230 = vmatprep.subr.mxu0 0.0
    %1231 = vmatpush1.msra.mxu0 0.0
    %1232 = vmatprep.subr.mxu0 0.0
    %1233 = vmatpush1.msra.mxu0 0.0
    %1234 = vmatprep.subr.mxu0 0.0
    %1235 = vmatpush1.msra.mxu0 0.0
    %1236 = vmatprep.subr.mxu0 0.0
    %1237 = vmatpush1.msra.mxu0 0.0
    %1238 = vmatprep.subr.mxu0 0.0
    %1239 = vmatpush1.msra.mxu0 0.0
    %1240 = vmatprep.subr.mxu0 0.0
    %1241 = vmatpush1.msra.mxu0 0.0
    %1242 = vmatprep.subr.mxu0 0.0
    %1243 = vmatpush1.msra.mxu0 0.0
    %1244 = vmatprep.mubr.f32.mxu0 0.0
    %1245 = vmatmul.mubr.f32.gmra.mrb[0].mxu0 %v1107
    %v1246 = vpop.f32.mrb[0].mxu0
    %v1247 = vadd.f32 %v1104, %v1246
    %v1248 = vpop.f32.mrb[0].mxu0
    %v1249 = vadd.f32 %v1104, %v1248
    %1250 = vdwg.mxu0
    %v1251 = vxor.u32 %v1176, 2147483648
    %v1252 = vxor.u32 %v1178, 2147483648
    %v1253 = vxor.u32 %v1247, 2147483648
    %v1254 = vxor.u32 %v1249, 2147483648
    %v1255 = vmul.f32 %v1251, 1.442695
    %v1256 = vpow.pop %v1255
    %v1257 = vmul.f32 %v1252, 1.442695
    %v1258 = vpow.pop %v1257
    %v1259 = vmul.f32 %v1253, 1.442695
    %v1260 = vpow.pop %v1259
    %v1261 = vmul.f32 %v1254, 1.442695
    %v1262 = vpow.pop %v1261
    %v1263 = vadd.f32 %v1256, 1.0
    %v1264 = vadd.f32 %v1258, 1.0
    %v1265 = vadd.f32 %v1260, 1.0
    %v1266 = vadd.f32 %v1262, 1.0
    %v1267 = vrcp.pop %v1263
    %v1268 = vmul.f32 1.0, %v1267
    %v1269 = vrcp.pop %v1264
    %v1270 = vmul.f32 1.0, %v1269
    %v1271 = vrcp.pop %v1265
    %v1272 = vmul.f32 1.0, %v1271
    %v1273 = vrcp.pop %v1266
    %v1274 = vmul.f32 1.0, %v1273
    %v1279 = vcombine.low %v1268, %v1270
    %v1280 = vcombine.low %v1272, %v1274
    %v1282 = vunpack.c.l.s4 1966171168
    %v1283 = vunpack.c.0.s8 %v1282
    %v1284 = vlaneseq
    %v1285 = vshrl.u32 %v1284, 7
    %v1286 = vsub.s32 %v1283, %v1285
    %v1287 = vrot.slane %v1279, %v1286
    %v1289 = vunpack.c.l.s4 1966171168
    %v1290 = vunpack.c.0.s8 %v1289
    %v1291 = vlaneseq
    %v1292 = vshrl.u32 %v1291, 7
    %v1293 = vsub.s32 %v1290, %v1292
    %v1294 = vrot.slane %v1280, %v1293
    %v1295 = vcombine.low %v1287, %v1294
    %v1297 = vunpack.c.l.s4 1966171168
    %v1298 = vunpack.c.0.s8 %v1297
    %v1299 = vlaneseq
    %v1300 = vshrl.u32 %v1299, 7
    %v1301 = vsub.s32 %v1298, %v1300
    %v1302 = vrot.slane %v1295, %v1301
    %v1304 = vlaneseq
    %vm1305 = vcmp.ge.s32.totalorder %v1304, 0
    %vm1306 = vcmp.lt.s32.totalorder %v1304, 512
    %vm1307 = vmand %vm1305, %vm1306
    %1308 = vst.msk [vmem:[#allocation8] sm:$0xf] %vm1307, %v1302
    %s1309 = scalar_lea.vmem [#allocation3], 864
    %v1310 = vld [vmem:[%s1309] sm:$0xff]
    %v1311 = vld [vmem:[%s1309 + $0x8] sm:$0xff]
    %v1312 = vld [vmem:[%s1309 + $0x10] sm:$0xff]
    %v1313 = vld [vmem:[%s1309 + $0x18] sm:$0xff]
    %v1314 = vld [vmem:[%s1309 + $0x20] sm:$0xff]
    %v1315 = vld [vmem:[%s1309 + $0x28] sm:$0xff]
    %v1316 = vld [vmem:[%s1309 + $0x30] sm:$0xff]
    %v1317 = vld [vmem:[%s1309 + $0x38] sm:$0xff]
    %v1318 = vld [vmem:[%s1309 + $0x40] sm:$0xff]
    %v1319 = vld [vmem:[%s1309 + $0x48] sm:$0xff]
    %v1320 = vld [vmem:[%s1309 + $0x50] sm:$0xff]
    %v1321 = vld [vmem:[%s1309 + $0x58] sm:$0xff]
    %v1322 = vld [vmem:[%s1309 + $0x60] sm:$0xff]
    %v1323 = vld [vmem:[%s1309 + $0x68] sm:$0xff]
    %v1324 = vld [vmem:[%s1309 + $0x70] sm:$0xff]
    %v1325 = vld [vmem:[%s1309 + $0x78] sm:$0xff]
    %v1326 = vld [vmem:[%s1309 + $0x80] sm:$0xff]
    %v1327 = vld [vmem:[%s1309 + $0x88] sm:$0xff]
    %v1328 = vld [vmem:[%s1309 + $0x90] sm:$0xff]
    %v1329 = vld [vmem:[%s1309 + $0x98] sm:$0xff]
    %v1330 = vld [vmem:[%s1309 + $0xa0] sm:$0xff]
    %v1331 = vld [vmem:[%s1309 + $0xa8] sm:$0xff]
    %v1332 = vld [vmem:[%s1309 + $0xb0] sm:$0xff]
    %v1333 = vld [vmem:[%s1309 + $0xb8] sm:$0xff]
    %v1334 = vld [vmem:[%s1309 + $0xc0] sm:$0xff]
    %v1335 = vld [vmem:[%s1309 + $0xc8] sm:$0xff]
    %v1336 = vld [vmem:[%s1309 + $0xd0] sm:$0xff]
    %v1337 = vld [vmem:[%s1309 + $0xd8] sm:$0xff]
    %v1338 = vld [vmem:[%s1309 + $0xe0] sm:$0xff]
    %v1339 = vld [vmem:[%s1309 + $0xe8] sm:$0xff]
    %v1340 = vld [vmem:[%s1309 + $0xf0] sm:$0xff]
    %v1341 = vld [vmem:[%s1309 + $0xf8] sm:$0xff]
    %v1342 = vld [vmem:[%s1309 + $0x100] sm:$0xff]
    %v1343 = vld [vmem:[%s1309 + $0x108] sm:$0xff]
    %v1344 = vld [vmem:[%s1309 + $0x110] sm:$0xff]
    %v1345 = vld [vmem:[%s1309 + $0x118] sm:$0xff]
    %v1346 = vld [vmem:[%s1309 + $0x120] sm:$0xff]
    %v1347 = vld [vmem:[%s1309 + $0x128] sm:$0xff]
    %v1348 = vld [vmem:[%s1309 + $0x130] sm:$0xff]
    %v1349 = vld [vmem:[%s1309 + $0x138] sm:$0xff]
    %v1350 = vld [vmem:[%s1309 + $0x140] sm:$0xff]
    %v1351 = vld [vmem:[%s1309 + $0x148] sm:$0xff]
    %v1352 = vld [vmem:[%s1309 + $0x150] sm:$0xff]
    %v1353 = vld [vmem:[%s1309 + $0x158] sm:$0xff]
    %v1354 = vld [vmem:[%s1309 + $0x160] sm:$0xff]
    %v1355 = vld [vmem:[%s1309 + $0x168] sm:$0xff]
    %v1356 = vld [vmem:[%s1309 + $0x170] sm:$0xff]
    %v1357 = vld [vmem:[%s1309 + $0x178] sm:$0xff]
    %v1358 = vld [vmem:[%s1309 + $0x180] sm:$0xff]
    %v1359 = vld [vmem:[%s1309 + $0x188] sm:$0xff]
    %v1360 = vld [vmem:[%s1309 + $0x190] sm:$0xff]
    %v1361 = vld [vmem:[%s1309 + $0x198] sm:$0xff]
    %v1362 = vld [vmem:[%s1309 + $0x1a0] sm:$0xff]
    %v1363 = vld [vmem:[%s1309 + $0x1a8] sm:$0xff]
    %v1364 = vld [vmem:[%s1309 + $0x1b0] sm:$0xff]
    %v1365 = vld [vmem:[%s1309 + $0x1b8] sm:$0xff]
    %v1366 = vld [vmem:[%s1309 + $0x1c0] sm:$0xff]
    %v1367 = vld [vmem:[%s1309 + $0x1c8] sm:$0xff]
    %v1368 = vld [vmem:[%s1309 + $0x1d0] sm:$0xff]
    %v1369 = vld [vmem:[%s1309 + $0x1d8] sm:$0xff]
    %v1370 = vld [vmem:[%s1309 + $0x1e0] sm:$0xff]
    %v1371 = vld [vmem:[%s1309 + $0x1e8] sm:$0xff]
    %v1372 = vld [vmem:[%s1309 + $0x1f0] sm:$0xff]
    %v1373 = vld [vmem:[%s1309 + $0x1f8] sm:$0xff]
    %v1374 = vld [vmem:[%s1309 + $0x200] sm:$0xff]
    %v1375 = vld [vmem:[%s1309 + $0x208] sm:$0xff]
    %v1376 = vld [vmem:[%s1309 + $0x210] sm:$0xff]
    %v1377 = vld [vmem:[%s1309 + $0x218] sm:$0xff]
    %v1378 = vld [vmem:[%s1309 + $0x220] sm:$0xff]
    %v1379 = vld [vmem:[%s1309 + $0x228] sm:$0xff]
    %v1380 = vld [vmem:[%s1309 + $0x230] sm:$0xff]
    %v1381 = vld [vmem:[%s1309 + $0x238] sm:$0xff]
    %v1382 = vld [vmem:[%s1309 + $0x240] sm:$0xff]
    %v1383 = vld [vmem:[%s1309 + $0x248] sm:$0xff]
    %v1384 = vld [vmem:[%s1309 + $0x250] sm:$0xff]
    %v1385 = vld [vmem:[%s1309 + $0x258] sm:$0xff]
    %v1386 = vld [vmem:[%s1309 + $0x260] sm:$0xff]
    %v1387 = vld [vmem:[%s1309 + $0x268] sm:$0xff]
    %v1388 = vld [vmem:[%s1309 + $0x270] sm:$0xff]
    %v1389 = vld [vmem:[%s1309 + $0x278] sm:$0xff]
    %v1390 = vld [vmem:[%s1309 + $0x280] sm:$0xff]
    %v1391 = vld [vmem:[%s1309 + $0x288] sm:$0xff]
    %v1392 = vld [vmem:[%s1309 + $0x290] sm:$0xff]
    %v1393 = vld [vmem:[%s1309 + $0x298] sm:$0xff]
    %v1394 = vld [vmem:[%s1309 + $0x2a0] sm:$0xff]
    %v1395 = vld [vmem:[%s1309 + $0x2a8] sm:$0xff]
    %v1396 = vld [vmem:[%s1309 + $0x2b0] sm:$0xff]
    %v1397 = vld [vmem:[%s1309 + $0x2b8] sm:$0xff]
    %v1398 = vld [vmem:[%s1309 + $0x2c0] sm:$0xff]
    %v1399 = vld [vmem:[%s1309 + $0x2c8] sm:$0xff]
    %v1400 = vld [vmem:[%s1309 + $0x2d0] sm:$0xff]
    %v1401 = vld [vmem:[%s1309 + $0x2d8] sm:$0xff]
    %v1402 = vld [vmem:[%s1309 + $0x2e0] sm:$0xff]
    %v1403 = vld [vmem:[%s1309 + $0x2e8] sm:$0xff]
    %v1404 = vld [vmem:[%s1309 + $0x2f0] sm:$0xff]
    %v1405 = vld [vmem:[%s1309 + $0x2f8] sm:$0xff]
    %v1406 = vld [vmem:[%s1309 + $0x300] sm:$0xff]
    %v1407 = vld [vmem:[%s1309 + $0x308] sm:$0xff]
    %v1408 = vld [vmem:[%s1309 + $0x310] sm:$0xff]
    %v1409 = vld [vmem:[%s1309 + $0x318] sm:$0xff]
    %v1410 = vld [vmem:[%s1309 + $0x320] sm:$0xff]
    %v1411 = vld [vmem:[%s1309 + $0x328] sm:$0xff]
    %v1412 = vld [vmem:[%s1309 + $0x330] sm:$0xff]
    %v1413 = vld [vmem:[%s1309 + $0x338] sm:$0xff]
    %v1414 = vld [vmem:[%s1309 + $0x340] sm:$0xff]
    %v1415 = vld [vmem:[%s1309 + $0x348] sm:$0xff]
    %v1416 = vld [vmem:[%s1309 + $0x350] sm:$0xff]
    %v1417 = vld [vmem:[%s1309 + $0x358] sm:$0xff]
    %v1526 = vunpack.c.l.b16 %v1310
    %v1527 = vunpack.c.h.b16 %v1310
    %v1528 = vunpack.c.l.b16 %v1311
    %v1529 = vunpack.c.h.b16 %v1311
    %v1530 = vunpack.c.l.b16 %v1312
    %v1531 = vunpack.c.h.b16 %v1312
    %v1532 = vunpack.c.l.b16 %v1313
    %v1533 = vunpack.c.h.b16 %v1313
    %v1534 = vunpack.c.l.b16 %v1314
    %v1535 = vunpack.c.h.b16 %v1314
    %v1536 = vunpack.c.l.b16 %v1315
    %v1537 = vunpack.c.h.b16 %v1315
    %v1538 = vunpack.c.l.b16 %v1316
    %v1539 = vunpack.c.h.b16 %v1316
    %v1540 = vunpack.c.l.b16 %v1317
    %v1541 = vunpack.c.h.b16 %v1317
    %v1542 = vunpack.c.l.b16 %v1318
    %v1543 = vunpack.c.h.b16 %v1318
    %v1544 = vunpack.c.l.b16 %v1319
    %v1545 = vunpack.c.h.b16 %v1319
    %v1546 = vunpack.c.l.b16 %v1320
    %v1547 = vunpack.c.h.b16 %v1320
    %v1548 = vunpack.c.l.b16 %v1321
    %v1549 = vunpack.c.h.b16 %v1321
    %v1550 = vunpack.c.l.b16 %v1322
    %v1551 = vunpack.c.h.b16 %v1322
    %v1552 = vunpack.c.l.b16 %v1323
    %v1553 = vunpack.c.h.b16 %v1323
    %v1554 = vunpack.c.l.b16 %v1324
    %v1555 = vunpack.c.h.b16 %v1324
    %v1556 = vunpack.c.l.b16 %v1325
    %v1557 = vunpack.c.h.b16 %v1325
    %v1558 = vunpack.c.l.b16 %v1326
    %v1559 = vunpack.c.h.b16 %v1326
    %v1560 = vunpack.c.l.b16 %v1327
    %v1561 = vunpack.c.h.b16 %v1327
    %v1562 = vunpack.c.l.b16 %v1328
    %v1563 = vunpack.c.h.b16 %v1328
    %v1564 = vunpack.c.l.b16 %v1329
    %v1565 = vunpack.c.h.b16 %v1329
    %v1566 = vunpack.c.l.b16 %v1330
    %v1567 = vunpack.c.h.b16 %v1330
    %v1568 = vunpack.c.l.b16 %v1331
    %v1569 = vunpack.c.h.b16 %v1331
    %v1570 = vunpack.c.l.b16 %v1332
    %v1571 = vunpack.c.h.b16 %v1332
    %v1572 = vunpack.c.l.b16 %v1333
    %v1573 = vunpack.c.h.b16 %v1333
    %v1574 = vunpack.c.l.b16 %v1334
    %v1575 = vunpack.c.h.b16 %v1334
    %v1576 = vunpack.c.l.b16 %v1335
    %v1577 = vunpack.c.h.b16 %v1335
    %v1578 = vunpack.c.l.b16 %v1336
    %v1579 = vunpack.c.h.b16 %v1336
    %v1580 = vunpack.c.l.b16 %v1337
    %v1581 = vunpack.c.h.b16 %v1337
    %v1582 = vunpack.c.l.b16 %v1338
    %v1583 = vunpack.c.h.b16 %v1338
    %v1584 = vunpack.c.l.b16 %v1339
    %v1585 = vunpack.c.h.b16 %v1339
    %v1586 = vunpack.c.l.b16 %v1340
    %v1587 = vunpack.c.h.b16 %v1340
    %v1588 = vunpack.c.l.b16 %v1341
    %v1589 = vunpack.c.h.b16 %v1341
    %v1590 = vunpack.c.l.b16 %v1342
    %v1591 = vunpack.c.h.b16 %v1342
    %v1592 = vunpack.c.l.b16 %v1343
    %v1593 = vunpack.c.h.b16 %v1343
    %v1594 = vunpack.c.l.b16 %v1344
    %v1595 = vunpack.c.h.b16 %v1344
    %v1596 = vunpack.c.l.b16 %v1345
    %v1597 = vunpack.c.h.b16 %v1345
    %v1598 = vunpack.c.l.b16 %v1346
    %v1599 = vunpack.c.h.b16 %v1346
    %v1600 = vunpack.c.l.b16 %v1347
    %v1601 = vunpack.c.h.b16 %v1347
    %v1602 = vunpack.c.l.b16 %v1348
    %v1603 = vunpack.c.h.b16 %v1348
    %v1604 = vunpack.c.l.b16 %v1349
    %v1605 = vunpack.c.h.b16 %v1349
    %v1606 = vunpack.c.l.b16 %v1350
    %v1607 = vunpack.c.h.b16 %v1350
    %v1608 = vunpack.c.l.b16 %v1351
    %v1609 = vunpack.c.h.b16 %v1351
    %v1610 = vunpack.c.l.b16 %v1352
    %v1611 = vunpack.c.h.b16 %v1352
    %v1612 = vunpack.c.l.b16 %v1353
    %v1613 = vunpack.c.h.b16 %v1353
    %v1614 = vunpack.c.l.b16 %v1354
    %v1615 = vunpack.c.h.b16 %v1354
    %v1616 = vunpack.c.l.b16 %v1355
    %v1617 = vunpack.c.h.b16 %v1355
    %v1618 = vunpack.c.l.b16 %v1356
    %v1619 = vunpack.c.h.b16 %v1356
    %v1620 = vunpack.c.l.b16 %v1357
    %v1621 = vunpack.c.h.b16 %v1357
    %v1622 = vunpack.c.l.b16 %v1358
    %v1623 = vunpack.c.h.b16 %v1358
    %v1624 = vunpack.c.l.b16 %v1359
    %v1625 = vunpack.c.h.b16 %v1359
    %v1626 = vunpack.c.l.b16 %v1360
    %v1627 = vunpack.c.h.b16 %v1360
    %v1628 = vunpack.c.l.b16 %v1361
    %v1629 = vunpack.c.h.b16 %v1361
    %v1630 = vunpack.c.l.b16 %v1362
    %v1631 = vunpack.c.h.b16 %v1362
    %v1632 = vunpack.c.l.b16 %v1363
    %v1633 = vunpack.c.h.b16 %v1363
    %v1634 = vunpack.c.l.b16 %v1364
    %v1635 = vunpack.c.h.b16 %v1364
    %v1636 = vunpack.c.l.b16 %v1365
    %v1637 = vunpack.c.h.b16 %v1365
    %v1638 = vunpack.c.l.b16 %v1366
    %v1639 = vunpack.c.h.b16 %v1366
    %v1640 = vunpack.c.l.b16 %v1367
    %v1641 = vunpack.c.h.b16 %v1367
    %v1642 = vunpack.c.l.b16 %v1368
    %v1643 = vunpack.c.h.b16 %v1368
    %v1644 = vunpack.c.l.b16 %v1369
    %v1645 = vunpack.c.h.b16 %v1369
    %v1646 = vunpack.c.l.b16 %v1370
    %v1647 = vunpack.c.h.b16 %v1370
    %v1648 = vunpack.c.l.b16 %v1371
    %v1649 = vunpack.c.h.b16 %v1371
    %v1650 = vunpack.c.l.b16 %v1372
    %v1651 = vunpack.c.h.b16 %v1372
    %v1652 = vunpack.c.l.b16 %v1373
    %v1653 = vunpack.c.h.b16 %v1373
    %v1654 = vunpack.c.l.b16 %v1374
    %v1655 = vunpack.c.h.b16 %v1374
    %v1656 = vunpack.c.l.b16 %v1375
    %v1657 = vunpack.c.h.b16 %v1375
    %v1658 = vunpack.c.l.b16 %v1376
    %v1659 = vunpack.c.h.b16 %v1376
    %v1660 = vunpack.c.l.b16 %v1377
    %v1661 = vunpack.c.h.b16 %v1377
    %v1662 = vunpack.c.l.b16 %v1378
    %v1663 = vunpack.c.h.b16 %v1378
    %v1664 = vunpack.c.l.b16 %v1379
    %v1665 = vunpack.c.h.b16 %v1379
    %v1666 = vunpack.c.l.b16 %v1380
    %v1667 = vunpack.c.h.b16 %v1380
    %v1668 = vunpack.c.l.b16 %v1381
    %v1669 = vunpack.c.h.b16 %v1381
    %v1670 = vunpack.c.l.b16 %v1382
    %v1671 = vunpack.c.h.b16 %v1382
    %v1672 = vunpack.c.l.b16 %v1383
    %v1673 = vunpack.c.h.b16 %v1383
    %v1674 = vunpack.c.l.b16 %v1384
    %v1675 = vunpack.c.h.b16 %v1384
    %v1676 = vunpack.c.l.b16 %v1385
    %v1677 = vunpack.c.h.b16 %v1385
    %v1678 = vunpack.c.l.b16 %v1386
    %v1679 = vunpack.c.h.b16 %v1386
    %v1680 = vunpack.c.l.b16 %v1387
    %v1681 = vunpack.c.h.b16 %v1387
    %v1682 = vunpack.c.l.b16 %v1388
    %v1683 = vunpack.c.h.b16 %v1388
    %v1684 = vunpack.c.l.b16 %v1389
    %v1685 = vunpack.c.h.b16 %v1389
    %v1686 = vunpack.c.l.b16 %v1390
    %v1687 = vunpack.c.h.b16 %v1390
    %v1688 = vunpack.c.l.b16 %v1391
    %v1689 = vunpack.c.h.b16 %v1391
    %v1690 = vunpack.c.l.b16 %v1392
    %v1691 = vunpack.c.h.b16 %v1392
    %v1692 = vunpack.c.l.b16 %v1393
    %v1693 = vunpack.c.h.b16 %v1393
    %v1694 = vunpack.c.l.b16 %v1394
    %v1695 = vunpack.c.h.b16 %v1394
    %v1696 = vunpack.c.l.b16 %v1395
    %v1697 = vunpack.c.h.b16 %v1395
    %v1698 = vunpack.c.l.b16 %v1396
    %v1699 = vunpack.c.h.b16 %v1396
    %v1700 = vunpack.c.l.b16 %v1397
    %v1701 = vunpack.c.h.b16 %v1397
    %v1702 = vunpack.c.l.b16 %v1398
    %v1703 = vunpack.c.h.b16 %v1398
    %v1704 = vunpack.c.l.b16 %v1399
    %v1705 = vunpack.c.h.b16 %v1399
    %v1706 = vunpack.c.l.b16 %v1400
    %v1707 = vunpack.c.h.b16 %v1400
    %v1708 = vunpack.c.l.b16 %v1401
    %v1709 = vunpack.c.h.b16 %v1401
    %v1710 = vunpack.c.l.b16 %v1402
    %v1711 = vunpack.c.h.b16 %v1402
    %v1712 = vunpack.c.l.b16 %v1403
    %v1713 = vunpack.c.h.b16 %v1403
    %v1714 = vunpack.c.l.b16 %v1404
    %v1715 = vunpack.c.h.b16 %v1404
    %v1716 = vunpack.c.l.b16 %v1405
    %v1717 = vunpack.c.h.b16 %v1405
    %v1718 = vunpack.c.l.b16 %v1406
    %v1719 = vunpack.c.h.b16 %v1406
    %v1720 = vunpack.c.l.b16 %v1407
    %v1721 = vunpack.c.h.b16 %v1407
    %v1722 = vunpack.c.l.b16 %v1408
    %v1723 = vunpack.c.h.b16 %v1408
    %v1724 = vunpack.c.l.b16 %v1409
    %v1725 = vunpack.c.h.b16 %v1409
    %v1726 = vunpack.c.l.b16 %v1410
    %v1727 = vunpack.c.h.b16 %v1410
    %v1728 = vunpack.c.l.b16 %v1411
    %v1729 = vunpack.c.h.b16 %v1411
    %v1730 = vunpack.c.l.b16 %v1412
    %v1731 = vunpack.c.h.b16 %v1412
    %v1732 = vunpack.c.l.b16 %v1413
    %v1733 = vunpack.c.h.b16 %v1413
    %v1734 = vunpack.c.l.b16 %v1414
    %v1735 = vunpack.c.h.b16 %v1414
    %v1736 = vunpack.c.l.b16 %v1415
    %v1737 = vunpack.c.h.b16 %v1415
    %v1738 = vunpack.c.l.b16 %v1416
    %v1739 = vunpack.c.h.b16 %v1416
    %v1740 = vunpack.c.l.b16 %v1417
    %v1741 = vunpack.c.h.b16 %v1417
    %v1742 = vpack.c.b16 %v1530, %v1526
    %v1743 = vpack.c.b16 %v1531, %v1527
    %v1744 = vpack.c.b16 %v1532, %v1528
    %v1745 = vpack.c.b16 %v1533, %v1529
    %v1746 = vpack.c.b16 %v1538, %v1534
    %v1747 = vpack.c.b16 %v1539, %v1535
    %v1748 = vpack.c.b16 %v1540, %v1536
    %v1749 = vpack.c.b16 %v1541, %v1537
    %v1750 = vpack.c.b16 %v1546, %v1542
    %v1751 = vpack.c.b16 %v1547, %v1543
    %v1752 = vpack.c.b16 %v1548, %v1544
    %v1753 = vpack.c.b16 %v1549, %v1545
    %v1754 = vpack.c.b16 %v1554, %v1550
    %v1755 = vpack.c.b16 %v1555, %v1551
    %v1756 = vpack.c.b16 %v1556, %v1552
    %v1757 = vpack.c.b16 %v1557, %v1553
    %v1758 = vpack.c.b16 %v1562, %v1558
    %v1759 = vpack.c.b16 %v1563, %v1559
    %v1760 = vpack.c.b16 %v1564, %v1560
    %v1761 = vpack.c.b16 %v1565, %v1561
    %v1762 = vpack.c.b16 %v1570, %v1566
    %v1763 = vpack.c.b16 %v1571, %v1567
    %v1764 = vpack.c.b16 %v1572, %v1568
    %v1765 = vpack.c.b16 %v1573, %v1569
    %v1766 = vpack.c.b16 %v1578, %v1574
    %v1767 = vpack.c.b16 %v1579, %v1575
    %v1768 = vpack.c.b16 %v1580, %v1576
    %v1769 = vpack.c.b16 %v1581, %v1577
    %v1770 = vpack.c.b16 %v1586, %v1582
    %v1771 = vpack.c.b16 %v1587, %v1583
    %v1772 = vpack.c.b16 %v1588, %v1584
    %v1773 = vpack.c.b16 %v1589, %v1585
    %v1774 = vpack.c.b16 %v1594, %v1590
    %v1775 = vpack.c.b16 %v1595, %v1591
    %v1776 = vpack.c.b16 %v1596, %v1592
    %v1777 = vpack.c.b16 %v1597, %v1593
    %v1778 = vpack.c.b16 %v1602, %v1598
    %v1779 = vpack.c.b16 %v1603, %v1599
    %v1780 = vpack.c.b16 %v1604, %v1600
    %v1781 = vpack.c.b16 %v1605, %v1601
    %v1782 = vpack.c.b16 %v1610, %v1606
    %v1783 = vpack.c.b16 %v1611, %v1607
    %v1784 = vpack.c.b16 %v1612, %v1608
    %v1785 = vpack.c.b16 %v1613, %v1609
    %v1786 = vpack.c.b16 %v1618, %v1614
    %v1787 = vpack.c.b16 %v1619, %v1615
    %v1788 = vpack.c.b16 %v1620, %v1616
    %v1789 = vpack.c.b16 %v1621, %v1617
    %v1790 = vpack.c.b16 %v1626, %v1622
    %v1791 = vpack.c.b16 %v1627, %v1623
    %v1792 = vpack.c.b16 %v1628, %v1624
    %v1793 = vpack.c.b16 %v1629, %v1625
    %v1794 = vpack.c.b16 %v1634, %v1630
    %v1795 = vpack.c.b16 %v1635, %v1631
    %v1796 = vpack.c.b16 %v1636, %v1632
    %v1797 = vpack.c.b16 %v1637, %v1633
    %v1798 = vpack.c.b16 %v1642, %v1638
    %v1799 = vpack.c.b16 %v1643, %v1639
    %v1800 = vpack.c.b16 %v1644, %v1640
    %v1801 = vpack.c.b16 %v1645, %v1641
    %v1802 = vpack.c.b16 %v1650, %v1646
    %v1803 = vpack.c.b16 %v1651, %v1647
    %v1804 = vpack.c.b16 %v1652, %v1648
    %v1805 = vpack.c.b16 %v1653, %v1649
    %v1806 = vpack.c.b16 %v1658, %v1654
    %v1807 = vpack.c.b16 %v1659, %v1655
    %v1808 = vpack.c.b16 %v1660, %v1656
    %v1809 = vpack.c.b16 %v1661, %v1657
    %v1810 = vpack.c.b16 %v1666, %v1662
    %v1811 = vpack.c.b16 %v1667, %v1663
    %v1812 = vpack.c.b16 %v1668, %v1664
    %v1813 = vpack.c.b16 %v1669, %v1665
    %v1814 = vpack.c.b16 %v1674, %v1670
    %v1815 = vpack.c.b16 %v1675, %v1671
    %v1816 = vpack.c.b16 %v1676, %v1672
    %v1817 = vpack.c.b16 %v1677, %v1673
    %v1818 = vpack.c.b16 %v1682, %v1678
    %v1819 = vpack.c.b16 %v1683, %v1679
    %v1820 = vpack.c.b16 %v1684, %v1680
    %v1821 = vpack.c.b16 %v1685, %v1681
    %v1822 = vpack.c.b16 %v1690, %v1686
    %v1823 = vpack.c.b16 %v1691, %v1687
    %v1824 = vpack.c.b16 %v1692, %v1688
    %v1825 = vpack.c.b16 %v1693, %v1689
    %v1826 = vpack.c.b16 %v1698, %v1694
    %v1827 = vpack.c.b16 %v1699, %v1695
    %v1828 = vpack.c.b16 %v1700, %v1696
    %v1829 = vpack.c.b16 %v1701, %v1697
    %v1830 = vpack.c.b16 %v1706, %v1702
    %v1831 = vpack.c.b16 %v1707, %v1703
    %v1832 = vpack.c.b16 %v1708, %v1704
    %v1833 = vpack.c.b16 %v1709, %v1705
    %v1834 = vpack.c.b16 %v1714, %v1710
    %v1835 = vpack.c.b16 %v1715, %v1711
    %v1836 = vpack.c.b16 %v1716, %v1712
    %v1837 = vpack.c.b16 %v1717, %v1713
    %v1838 = vpack.c.b16 %v1722, %v1718
    %v1839 = vpack.c.b16 %v1723, %v1719
    %v1840 = vpack.c.b16 %v1724, %v1720
    %v1841 = vpack.c.b16 %v1725, %v1721
    %v1842 = vpack.c.b16 %v1730, %v1726
    %v1843 = vpack.c.b16 %v1731, %v1727
    %v1844 = vpack.c.b16 %v1732, %v1728
    %v1845 = vpack.c.b16 %v1733, %v1729
    %v1846 = vpack.c.b16 %v1738, %v1734
    %v1847 = vpack.c.b16 %v1739, %v1735
    %v1848 = vpack.c.b16 %v1740, %v1736
    %v1849 = vpack.c.b16 %v1741, %v1737
    %1958 = vmatprep.subr.bf16.mxu0 %v1743
    %1959 = vmatpush1.bf16.msra.mxu0 %v1742
    %1960 = vmatprep.subr.bf16.mxu0 %v1747
    %1961 = vmatpush1.bf16.msra.mxu0 %v1746
    %1962 = vmatprep.subr.bf16.mxu0 %v1751
    %1963 = vmatpush1.bf16.msra.mxu0 %v1750
    %1964 = vmatprep.subr.bf16.mxu0 %v1755
    %1965 = vmatpush1.bf16.msra.mxu0 %v1754
    %1966 = vmatprep.subr.bf16.mxu0 %v1759
    %1967 = vmatpush1.bf16.msra.mxu0 %v1758
    %1968 = vmatprep.subr.bf16.mxu0 %v1763
    %1969 = vmatpush1.bf16.msra.mxu0 %v1762
    %1970 = vmatprep.subr.bf16.mxu0 %v1767
    %1971 = vmatpush1.bf16.msra.mxu0 %v1766
    %1972 = vmatprep.subr.bf16.mxu0 %v1771
    %1973 = vmatpush1.bf16.msra.mxu0 %v1770
    %1974 = vmatprep.subr.bf16.mxu0 %v1775
    %1975 = vmatpush1.bf16.msra.mxu0 %v1774
    %1976 = vmatprep.subr.bf16.mxu0 %v1779
    %1977 = vmatpush1.bf16.msra.mxu0 %v1778
    %1978 = vmatprep.subr.bf16.mxu0 %v1783
    %1979 = vmatpush1.bf16.msra.mxu0 %v1782
    %1980 = vmatprep.subr.bf16.mxu0 %v1787
    %1981 = vmatpush1.bf16.msra.mxu0 %v1786
    %1982 = vmatprep.subr.bf16.mxu0 %v1791
    %1983 = vmatpush1.bf16.msra.mxu0 %v1790
    %1984 = vmatprep.subr.bf16.mxu0 %v1795
    %1985 = vmatpush1.bf16.msra.mxu0 %v1794
    %1986 = vmatprep.subr.bf16.mxu0 %v1799
    %1987 = vmatpush1.bf16.msra.mxu0 %v1798
    %1988 = vmatprep.subr.bf16.mxu0 %v1803
    %1989 = vmatpush1.bf16.msra.mxu0 %v1802
    %1990 = vmatprep.mubr.bf16.mxu0 %v192
    %1991 = vmatmul.mubr.bf16.gmra.mrb[0].mxu0 %v191
    %v1992 = vpop.f32.mrb[0].mxu0
    %v1993 = vadd.f32 0.0, %v1992
    %v1994 = vpop.f32.mrb[0].mxu0
    %v1995 = vadd.f32 0.0, %v1994
    %v1996 = vpop.f32.mrb[0].mxu0
    %v1997 = vadd.f32 0.0, %v1996
    %v1998 = vpop.f32.mrb[0].mxu0
    %v1999 = vadd.f32 0.0, %v1998
    %2000 = vmatprep.mubr.bf16.mxu0 %v196
    %2001 = vmatmul.mubr.bf16.gmra.mrb[0].mxu0 %v195
    %v2002 = vpop.f32.mrb[0].mxu0
    %v2003 = vadd.f32 0.0, %v2002
    %v2004 = vpop.f32.mrb[0].mxu0
    %v2005 = vadd.f32 0.0, %v2004
    %v2006 = vpop.f32.mrb[0].mxu0
    %v2007 = vadd.f32 0.0, %v2006
    %v2008 = vpop.f32.mrb[0].mxu0
    %v2009 = vadd.f32 0.0, %v2008
    %2010 = vdwg.mxu0
    %2011 = vmatprep.subr.bf16.mxu0 %v1807
    %2012 = vmatpush1.bf16.msra.mxu0 %v1806
    %2013 = vmatprep.subr.bf16.mxu0 %v1811
    %2014 = vmatpush1.bf16.msra.mxu0 %v1810
    %2015 = vmatprep.subr.bf16.mxu0 %v1815
    %2016 = vmatpush1.bf16.msra.mxu0 %v1814
    %2017 = vmatprep.subr.bf16.mxu0 %v1819
    %2018 = vmatpush1.bf16.msra.mxu0 %v1818
    %2019 = vmatprep.subr.bf16.mxu0 %v1823
    %2020 = vmatpush1.bf16.msra.mxu0 %v1822
    %2021 = vmatprep.subr.bf16.mxu0 %v1827
    %2022 = vmatpush1.bf16.msra.mxu0 %v1826
    %2023 = vmatprep.subr.bf16.mxu0 %v1831
    %2024 = vmatpush1.bf16.msra.mxu0 %v1830
    %2025 = vmatprep.subr.bf16.mxu0 %v1835
    %2026 = vmatpush1.bf16.msra.mxu0 %v1834
    %2027 = vmatprep.subr.bf16.mxu0 %v1839
    %2028 = vmatpush1.bf16.msra.mxu0 %v1838
    %2029 = vmatprep.subr.bf16.mxu0 %v1843
    %2030 = vmatpush1.bf16.msra.mxu0 %v1842
    %2031 = vmatprep.subr.bf16.mxu0 %v1847
    %2032 = vmatpush1.bf16.msra.mxu0 %v1846
    %2033 = vmatprep.subr.bf16.mxu0 0
    %2034 = vmatpush1.bf16.msra.mxu0 0
    %2035 = vmatprep.subr.bf16.mxu0 0
    %2036 = vmatpush1.bf16.msra.mxu0 0
    %2037 = vmatprep.subr.bf16.mxu0 0
    %2038 = vmatpush1.bf16.msra.mxu0 0
    %2039 = vmatprep.subr.bf16.mxu0 0
    %2040 = vmatpush1.bf16.msra.mxu0 0
    %2041 = vmatprep.subr.bf16.mxu0 0
    %2042 = vmatpush1.bf16.msra.mxu0 0
    %2043 = vmatprep.mubr.bf16.mxu0 %v747
    %2044 = vmatmul.mubr.bf16.gmra.mrb[0].mxu0 %v193
    %v2045 = vpop.f32.mrb[0].mxu0
    %v2046 = vadd.f32 %v1993, %v2045
    %v2047 = vpop.f32.mrb[0].mxu0
    %v2048 = vadd.f32 %v1995, %v2047
    %v2049 = vpop.f32.mrb[0].mxu0
    %v2050 = vadd.f32 %v1997, %v2049
    %v2051 = vpop.f32.mrb[0].mxu0
    %v2052 = vadd.f32 %v1999, %v2051
    %2053 = vmatprep.mubr.bf16.mxu0 %v750
    %2054 = vmatmul.mubr.bf16.gmra.mrb[0].mxu0 %v197
    %v2055 = vpop.f32.mrb[0].mxu0
    %v2056 = vadd.f32 %v2003, %v2055
    %v2057 = vpop.f32.mrb[0].mxu0
    %v2058 = vadd.f32 %v2005, %v2057
    %v2059 = vpop.f32.mrb[0].mxu0
    %v2060 = vadd.f32 %v2007, %v2059
    %v2061 = vpop.f32.mrb[0].mxu0
    %v2062 = vadd.f32 %v2009, %v2061
    %2063 = vdwg.mxu0
    %2064 = vmatprep.subr.bf16.mxu0 %v1745
    %2065 = vmatpush1.bf16.msra.mxu0 %v1744
    %2066 = vmatprep.subr.bf16.mxu0 %v1749
    %2067 = vmatpush1.bf16.msra.mxu0 %v1748
    %2068 = vmatprep.subr.bf16.mxu0 %v1753
    %2069 = vmatpush1.bf16.msra.mxu0 %v1752
    %2070 = vmatprep.subr.bf16.mxu0 %v1757
    %2071 = vmatpush1.bf16.msra.mxu0 %v1756
    %2072 = vmatprep.subr.bf16.mxu0 %v1761
    %2073 = vmatpush1.bf16.msra.mxu0 %v1760
    %2074 = vmatprep.subr.bf16.mxu0 %v1765
    %2075 = vmatpush1.bf16.msra.mxu0 %v1764
    %2076 = vmatprep.subr.bf16.mxu0 %v1769
    %2077 = vmatpush1.bf16.msra.mxu0 %v1768
    %2078 = vmatprep.subr.bf16.mxu0 %v1773
    %2079 = vmatpush1.bf16.msra.mxu0 %v1772
    %2080 = vmatprep.subr.bf16.mxu0 %v1777
    %2081 = vmatpush1.bf16.msra.mxu0 %v1776
    %2082 = vmatprep.subr.bf16.mxu0 %v1781
    %2083 = vmatpush1.bf16.msra.mxu0 %v1780
    %2084 = vmatprep.subr.bf16.mxu0 %v1785
    %2085 = vmatpush1.bf16.msra.mxu0 %v1784
    %2086 = vmatprep.subr.bf16.mxu0 %v1789
    %2087 = vmatpush1.bf16.msra.mxu0 %v1788
    %2088 = vmatprep.subr.bf16.mxu0 %v1793
    %2089 = vmatpush1.bf16.msra.mxu0 %v1792
    %2090 = vmatprep.subr.bf16.mxu0 %v1797
    %2091 = vmatpush1.bf16.msra.mxu0 %v1796
    %2092 = vmatprep.subr.bf16.mxu0 %v1801
    %2093 = vmatpush1.bf16.msra.mxu0 %v1800
    %2094 = vmatprep.subr.bf16.mxu0 %v1805
    %2095 = vmatpush1.bf16.msra.mxu0 %v1804
    %2096 = vmatprep.mubr.bf16.mxu0 %v192
    %2097 = vmatmul.mubr.bf16.gmra.mrb[0].mxu0 %v191
    %v2098 = vpop.f32.mrb[0].mxu0
    %v2099 = vadd.f32 0.0, %v2098
    %v2100 = vpop.f32.mrb[0].mxu0
    %v2101 = vadd.f32 0.0, %v2100
    %v2102 = vpop.f32.mrb[0].mxu0
    %v2103 = vadd.f32 0.0, %v2102
    %v2104 = vpop.f32.mrb[0].mxu0
    %v2105 = vadd.f32 0.0, %v2104
    %2106 = vmatprep.mubr.bf16.mxu0 %v196
    %2107 = vmatmul.mubr.bf16.gmra.mrb[0].mxu0 %v195
    %v2108 = vpop.f32.mrb[0].mxu0
    %v2109 = vadd.f32 0.0, %v2108
    %v2110 = vpop.f32.mrb[0].mxu0
    %v2111 = vadd.f32 0.0, %v2110
    %v2112 = vpop.f32.mrb[0].mxu0
    %v2113 = vadd.f32 0.0, %v2112
    %v2114 = vpop.f32.mrb[0].mxu0
    %v2115 = vadd.f32 0.0, %v2114
    %2116 = vdwg.mxu0
    %2117 = vmatprep.subr.bf16.mxu0 %v1809
    %2118 = vmatpush1.bf16.msra.mxu0 %v1808
    %2119 = vmatprep.subr.bf16.mxu0 %v1813
    %2120 = vmatpush1.bf16.msra.mxu0 %v1812
    %2121 = vmatprep.subr.bf16.mxu0 %v1817
    %2122 = vmatpush1.bf16.msra.mxu0 %v1816
    %2123 = vmatprep.subr.bf16.mxu0 %v1821
    %2124 = vmatpush1.bf16.msra.mxu0 %v1820
    %2125 = vmatprep.subr.bf16.mxu0 %v1825
    %2126 = vmatpush1.bf16.msra.mxu0 %v1824
    %2127 = vmatprep.subr.bf16.mxu0 %v1829
    %2128 = vmatpush1.bf16.msra.mxu0 %v1828
    %2129 = vmatprep.subr.bf16.mxu0 %v1833
    %2130 = vmatpush1.bf16.msra.mxu0 %v1832
    %2131 = vmatprep.subr.bf16.mxu0 %v1837
    %2132 = vmatpush1.bf16.msra.mxu0 %v1836
    %2133 = vmatprep.subr.bf16.mxu0 %v1841
    %2134 = vmatpush1.bf16.msra.mxu0 %v1840
    %2135 = vmatprep.subr.bf16.mxu0 %v1845
    %2136 = vmatpush1.bf16.msra.mxu0 %v1844
    %2137 = vmatprep.subr.bf16.mxu0 %v1849
    %2138 = vmatpush1.bf16.msra.mxu0 %v1848
    %2139 = vmatprep.subr.bf16.mxu0 0
    %2140 = vmatpush1.bf16.msra.mxu0 0
    %2141 = vmatprep.subr.bf16.mxu0 0
    %2142 = vmatpush1.bf16.msra.mxu0 0
    %2143 = vmatprep.subr.bf16.mxu0 0
    %2144 = vmatpush1.bf16.msra.mxu0 0
    %2145 = vmatprep.subr.bf16.mxu0 0
    %2146 = vmatpush1.bf16.msra.mxu0 0
    %2147 = vmatprep.subr.bf16.mxu0 0
    %2148 = vmatpush1.bf16.msra.mxu0 0
    %2149 = vmatprep.mubr.bf16.mxu0 %v747
    %2150 = vmatmul.mubr.bf16.gmra.mrb[0].mxu0 %v193
    %v2151 = vpop.f32.mrb[0].mxu0
    %v2152 = vadd.f32 %v2099, %v2151
    %v2153 = vpop.f32.mrb[0].mxu0
    %v2154 = vadd.f32 %v2101, %v2153
    %v2155 = vpop.f32.mrb[0].mxu0
    %v2156 = vadd.f32 %v2103, %v2155
    %v2157 = vpop.f32.mrb[0].mxu0
    %v2158 = vadd.f32 %v2105, %v2157
    %2159 = vmatprep.mubr.bf16.mxu0 %v750
    %2160 = vmatmul.mubr.bf16.gmra.mrb[0].mxu0 %v197
    %v2161 = vpop.f32.mrb[0].mxu0
    %v2162 = vadd.f32 %v2109, %v2161
    %v2163 = vpop.f32.mrb[0].mxu0
    %v2164 = vadd.f32 %v2111, %v2163
    %v2165 = vpop.f32.mrb[0].mxu0
    %v2166 = vadd.f32 %v2113, %v2165
    %v2167 = vpop.f32.mrb[0].mxu0
    %v2168 = vadd.f32 %v2115, %v2167
    %2169 = vdwg.mxu0
    %v2170 = vadd.f32 %v2046, %v2048
    %v2171 = vadd.f32 %v2170, %v2152
    %v2172 = vadd.f32 %v2171, %v2154
    %2173 = vadd.xlane.f32.xlu0 %v2172
    %v2174 = vpop.xlane.xlu0 %2173
    %v2175 = vadd.f32 %v2050, %v2052
    %v2176 = vadd.f32 %v2175, %v2156
    %v2177 = vadd.f32 %v2176, %v2158
    %2178 = vadd.xlane.f32.xlu0 %v2177
    %v2179 = vpop.xlane.xlu0 %2178
    %v2180 = vadd.f32 %v2056, %v2058
    %v2181 = vadd.f32 %v2180, %v2162
    %v2182 = vadd.f32 %v2181, %v2164
    %2183 = vadd.xlane.f32.xlu0 %v2182
    %v2184 = vpop.xlane.xlu0 %2183
    %v2185 = vadd.f32 %v2060, %v2062
    %v2186 = vadd.f32 %v2185, %v2166
    %v2187 = vadd.f32 %v2186, %v2168
    %2188 = vadd.xlane.f32.xlu0 %v2187
    %v2189 = vpop.xlane.xlu0 %2188
    %v2190 = vmul.f32 %v2174, 0.001953125
    %v2191 = vmul.f32 %v2179, 0.001953125
    %v2192 = vmul.f32 %v2184, 0.001953125
    %v2193 = vmul.f32 %v2189, 0.001953125
    %v2194 = vmul.f32 %v2046, %v2046
    %v2195 = vmul.f32 %v2048, %v2048
    %v2196 = vmul.f32 %v2152, %v2152
    %v2197 = vmul.f32 %v2154, %v2154
    %v2198 = vmul.f32 %v2050, %v2050
    %v2199 = vmul.f32 %v2052, %v2052
    %v2200 = vmul.f32 %v2156, %v2156
    %v2201 = vmul.f32 %v2158, %v2158
    %v2202 = vmul.f32 %v2056, %v2056
    %v2203 = vmul.f32 %v2058, %v2058
    %v2204 = vmul.f32 %v2162, %v2162
    %v2205 = vmul.f32 %v2164, %v2164
    %v2206 = vmul.f32 %v2060, %v2060
    %v2207 = vmul.f32 %v2062, %v2062
    %v2208 = vmul.f32 %v2166, %v2166
    %v2209 = vmul.f32 %v2168, %v2168
    %v2210 = vadd.f32 %v2194, %v2195
    %v2211 = vadd.f32 %v2210, %v2196
    %v2212 = vadd.f32 %v2211, %v2197
    %2213 = vadd.xlane.f32.xlu0 %v2212
    %v2214 = vpop.xlane.xlu0 %2213
    %v2215 = vadd.f32 %v2198, %v2199
    %v2216 = vadd.f32 %v2215, %v2200
    %v2217 = vadd.f32 %v2216, %v2201
    %2218 = vadd.xlane.f32.xlu0 %v2217
    %v2219 = vpop.xlane.xlu0 %2218
    %v2220 = vadd.f32 %v2202, %v2203
    %v2221 = vadd.f32 %v2220, %v2204
    %v2222 = vadd.f32 %v2221, %v2205
    %2223 = vadd.xlane.f32.xlu0 %v2222
    %v2224 = vpop.xlane.xlu0 %2223
    %v2225 = vadd.f32 %v2206, %v2207
    %v2226 = vadd.f32 %v2225, %v2208
    %v2227 = vadd.f32 %v2226, %v2209
    %2228 = vadd.xlane.f32.xlu0 %v2227
    %v2229 = vpop.xlane.xlu0 %2228
    %v2230 = vmul.f32 %v2214, 0.001953125
    %v2231 = vmul.f32 %v2219, 0.001953125
    %v2232 = vmul.f32 %v2224, 0.001953125
    %v2233 = vmul.f32 %v2229, 0.001953125
    %v2234 = vmul.f32 %v2190, %v2190
    %v2235 = vmul.f32 %v2191, %v2191
    %v2236 = vmul.f32 %v2192, %v2192
    %v2237 = vmul.f32 %v2193, %v2193
    %v2238 = vsub.f32 %v2230, %v2234
    %v2239 = vsub.f32 %v2231, %v2235
    %v2240 = vsub.f32 %v2232, %v2236
    %v2241 = vsub.f32 %v2233, %v2237
    %v2242 = vmax.f32 %v2238, 0.0
    %v2243 = vmax.f32 %v2239, 0.0
    %v2244 = vmax.f32 %v2240, 0.0
    %v2245 = vmax.f32 %v2241, 0.0
    %v2246 = vsub.f32 %v2046, %v2190
    %v2247 = vsub.f32 %v2048, %v2190
    %v2248 = vsub.f32 %v2152, %v2190
    %v2249 = vsub.f32 %v2154, %v2190
    %v2250 = vsub.f32 %v2050, %v2191
    %v2251 = vsub.f32 %v2052, %v2191
    %v2252 = vsub.f32 %v2156, %v2191
    %v2253 = vsub.f32 %v2158, %v2191
    %v2254 = vsub.f32 %v2056, %v2192
    %v2255 = vsub.f32 %v2058, %v2192
    %v2256 = vsub.f32 %v2162, %v2192
    %v2257 = vsub.f32 %v2164, %v2192
    %v2258 = vsub.f32 %v2060, %v2193
    %v2259 = vsub.f32 %v2062, %v2193
    %v2260 = vsub.f32 %v2166, %v2193
    %v2261 = vsub.f32 %v2168, %v2193
    %v2262 = vadd.f32 %v2242, 1e-05
    %v2263 = vadd.f32 %v2243, 1e-05
    %v2264 = vadd.f32 %v2244, 1e-05
    %v2265 = vadd.f32 %v2245, 1e-05
    %v2266 = vrsqrt.pop %v2262
    %v2267 = vrsqrt.pop %v2263
    %v2268 = vrsqrt.pop %v2264
    %v2269 = vrsqrt.pop %v2265
    %v2270 = vmul.f32 %v2246, %v2266
    %v2271 = vmul.f32 %v2247, %v2266
    %v2272 = vmul.f32 %v2248, %v2266
    %v2273 = vmul.f32 %v2249, %v2266
    %v2274 = vmul.f32 %v2250, %v2267
    %v2275 = vmul.f32 %v2251, %v2267
    %v2276 = vmul.f32 %v2252, %v2267
    %v2277 = vmul.f32 %v2253, %v2267
    %v2278 = vmul.f32 %v2254, %v2268
    %v2279 = vmul.f32 %v2255, %v2268
    %v2280 = vmul.f32 %v2256, %v2268
    %v2281 = vmul.f32 %v2257, %v2268
    %v2282 = vmul.f32 %v2258, %v2269
    %v2283 = vmul.f32 %v2259, %v2269
    %v2284 = vmul.f32 %v2260, %v2269
    %v2285 = vmul.f32 %v2261, %v2269
    %v2286 = vmax.f32 %v2270, 0.0
    %v2287 = vmax.f32 %v2271, 0.0
    %v2288 = vmax.f32 %v2272, 0.0
    %v2289 = vmax.f32 %v2273, 0.0
    %v2290 = vmax.f32 %v2274, 0.0
    %v2291 = vmax.f32 %v2275, 0.0
    %v2292 = vmax.f32 %v2276, 0.0
    %v2293 = vmax.f32 %v2277, 0.0
    %v2294 = vmax.f32 %v2278, 0.0
    %v2295 = vmax.f32 %v2279, 0.0
    %v2296 = vmax.f32 %v2280, 0.0
    %v2297 = vmax.f32 %v2281, 0.0
    %v2298 = vmax.f32 %v2282, 0.0
    %v2299 = vmax.f32 %v2283, 0.0
    %v2300 = vmax.f32 %v2284, 0.0
    %v2301 = vmax.f32 %v2285, 0.0
    %2302 = vmatprep.subr.mxu0 %v2287
    %2303 = vmatpush1.msra.mxu0 %v2286
    %2304 = vmatprep.subr.mxu0 %v2291
    %2305 = vmatpush1.msra.mxu0 %v2290
    %2306 = vmatprep.subr.mxu0 %v2295
    %2307 = vmatpush1.msra.mxu0 %v2294
    %2308 = vmatprep.subr.mxu0 %v2299
    %2309 = vmatpush1.msra.mxu0 %v2298
    %2310 = vmatprep.subr.mxu0 0.0
    %2311 = vmatpush1.msra.mxu0 0.0
    %2312 = vmatprep.subr.mxu0 0.0
    %2313 = vmatpush1.msra.mxu0 0.0
    %2314 = vmatprep.subr.mxu0 0.0
    %2315 = vmatpush1.msra.mxu0 0.0
    %2316 = vmatprep.subr.mxu0 0.0
    %2317 = vmatpush1.msra.mxu0 0.0
    %2318 = vmatprep.subr.mxu0 0.0
    %2319 = vmatpush1.msra.mxu0 0.0
    %2320 = vmatprep.subr.mxu0 0.0
    %2321 = vmatpush1.msra.mxu0 0.0
    %2322 = vmatprep.subr.mxu0 0.0
    %2323 = vmatpush1.msra.mxu0 0.0
    %2324 = vmatprep.subr.mxu0 0.0
    %2325 = vmatpush1.msra.mxu0 0.0
    %2326 = vmatprep.subr.mxu0 0.0
    %2327 = vmatpush1.msra.mxu0 0.0
    %2328 = vmatprep.subr.mxu0 0.0
    %2329 = vmatpush1.msra.mxu0 0.0
    %2330 = vmatprep.subr.mxu0 0.0
    %2331 = vmatpush1.msra.mxu0 0.0
    %2332 = vmatprep.subr.mxu0 0.0
    %2333 = vmatpush1.msra.mxu0 0.0
    %2334 = vmatprep.subr.mxu0 0.0
    %2335 = vmatpush1.msra.mxu0 0.0
    %2336 = vmatprep.subr.mxu0 0.0
    %2337 = vmatpush1.msra.mxu0 0.0
    %2338 = vmatprep.subr.mxu0 0.0
    %2339 = vmatpush1.msra.mxu0 0.0
    %2340 = vmatprep.subr.mxu0 0.0
    %2341 = vmatpush1.msra.mxu0 0.0
    %2342 = vmatprep.subr.mxu0 0.0
    %2343 = vmatpush1.msra.mxu0 0.0
    %2344 = vmatprep.subr.mxu0 0.0
    %2345 = vmatpush1.msra.mxu0 0.0
    %2346 = vmatprep.subr.mxu0 0.0
    %2347 = vmatpush1.msra.mxu0 0.0
    %2348 = vmatprep.subr.mxu0 0.0
    %2349 = vmatpush1.msra.mxu0 0.0
    %2350 = vmatprep.subr.mxu0 0.0
    %2351 = vmatpush1.msra.mxu0 0.0
    %2352 = vmatprep.subr.mxu0 0.0
    %2353 = vmatpush1.msra.mxu0 0.0
    %2354 = vmatprep.subr.mxu0 0.0
    %2355 = vmatpush1.msra.mxu0 0.0
    %2356 = vmatprep.subr.mxu0 0.0
    %2357 = vmatpush1.msra.mxu0 0.0
    %2358 = vmatprep.subr.mxu0 0.0
    %2359 = vmatpush1.msra.mxu0 0.0
    %2360 = vmatprep.subr.mxu0 0.0
    %2361 = vmatpush1.msra.mxu0 0.0
    %2362 = vmatprep.subr.mxu0 0.0
    %2363 = vmatpush1.msra.mxu0 0.0
    %2364 = vmatprep.subr.mxu0 0.0
    %2365 = vmatpush1.msra.mxu0 0.0
    %2366 = vmatprep.mubr.f32.mxu0 0.0
    %2367 = vmatmul.mubr.f32.gmra.mrb[0].mxu0 %v1107
    %v2368 = vpop.f32.mrb[0].mxu0
    %v2369 = vadd.f32 %v1104, %v2368
    %v2370 = vpop.f32.mrb[0].mxu0
    %v2371 = vadd.f32 %v1104, %v2370
    %2372 = vdwg.mxu0
    %2373 = vmatprep.subr.mxu0 %v2289
    %2374 = vmatpush1.msra.mxu0 %v2288
    %2375 = vmatprep.subr.mxu0 %v2293
    %2376 = vmatpush1.msra.mxu0 %v2292
    %2377 = vmatprep.subr.mxu0 %v2297
    %2378 = vmatpush1.msra.mxu0 %v2296
    %2379 = vmatprep.subr.mxu0 %v2301
    %2380 = vmatpush1.msra.mxu0 %v2300
    %2381 = vmatprep.subr.mxu0 0.0
    %2382 = vmatpush1.msra.mxu0 0.0
    %2383 = vmatprep.subr.mxu0 0.0
    %2384 = vmatpush1.msra.mxu0 0.0
    %2385 = vmatprep.subr.mxu0 0.0
    %2386 = vmatpush1.msra.mxu0 0.0
    %2387 = vmatprep.subr.mxu0 0.0
    %2388 = vmatpush1.msra.mxu0 0.0
    %2389 = vmatprep.subr.mxu0 0.0
    %2390 = vmatpush1.msra.mxu0 0.0
    %2391 = vmatprep.subr.mxu0 0.0
    %2392 = vmatpush1.msra.mxu0 0.0
    %2393 = vmatprep.subr.mxu0 0.0
    %2394 = vmatpush1.msra.mxu0 0.0
    %2395 = vmatprep.subr.mxu0 0.0
    %2396 = vmatpush1.msra.mxu0 0.0
    %2397 = vmatprep.subr.mxu0 0.0
    %2398 = vmatpush1.msra.mxu0 0.0
    %2399 = vmatprep.subr.mxu0 0.0
    %2400 = vmatpush1.msra.mxu0 0.0
    %2401 = vmatprep.subr.mxu0 0.0
    %2402 = vmatpush1.msra.mxu0 0.0
    %2403 = vmatprep.subr.mxu0 0.0
    %2404 = vmatpush1.msra.mxu0 0.0
    %2405 = vmatprep.subr.mxu0 0.0
    %2406 = vmatpush1.msra.mxu0 0.0
    %2407 = vmatprep.subr.mxu0 0.0
    %2408 = vmatpush1.msra.mxu0 0.0
    %2409 = vmatprep.subr.mxu0 0.0
    %2410 = vmatpush1.msra.mxu0 0.0
    %2411 = vmatprep.subr.mxu0 0.0
    %2412 = vmatpush1.msra.mxu0 0.0
    %2413 = vmatprep.subr.mxu0 0.0
    %2414 = vmatpush1.msra.mxu0 0.0
    %2415 = vmatprep.subr.mxu0 0.0
    %2416 = vmatpush1.msra.mxu0 0.0
    %2417 = vmatprep.subr.mxu0 0.0
    %2418 = vmatpush1.msra.mxu0 0.0
    %2419 = vmatprep.subr.mxu0 0.0
    %2420 = vmatpush1.msra.mxu0 0.0
    %2421 = vmatprep.subr.mxu0 0.0
    %2422 = vmatpush1.msra.mxu0 0.0
    %2423 = vmatprep.subr.mxu0 0.0
    %2424 = vmatpush1.msra.mxu0 0.0
    %2425 = vmatprep.subr.mxu0 0.0
    %2426 = vmatpush1.msra.mxu0 0.0
    %2427 = vmatprep.subr.mxu0 0.0
    %2428 = vmatpush1.msra.mxu0 0.0
    %2429 = vmatprep.subr.mxu0 0.0
    %2430 = vmatpush1.msra.mxu0 0.0
    %2431 = vmatprep.subr.mxu0 0.0
    %2432 = vmatpush1.msra.mxu0 0.0
    %2433 = vmatprep.subr.mxu0 0.0
    %2434 = vmatpush1.msra.mxu0 0.0
    %2435 = vmatprep.subr.mxu0 0.0
    %2436 = vmatpush1.msra.mxu0 0.0
    %2437 = vmatprep.mubr.f32.mxu0 0.0
    %2438 = vmatmul.mubr.f32.gmra.mrb[0].mxu0 %v1107
    %v2439 = vpop.f32.mrb[0].mxu0
    %v2440 = vadd.f32 %v1104, %v2439
    %v2441 = vpop.f32.mrb[0].mxu0
    %v2442 = vadd.f32 %v1104, %v2441
    %2443 = vdwg.mxu0
    %v2444 = vxor.u32 %v2369, 2147483648
    %v2445 = vxor.u32 %v2371, 2147483648
    %v2446 = vxor.u32 %v2440, 2147483648
    %v2447 = vxor.u32 %v2442, 2147483648
    %v2448 = vmul.f32 %v2444, 1.442695
    %v2449 = vpow.pop %v2448
    %v2450 = vmul.f32 %v2445, 1.442695
    %v2451 = vpow.pop %v2450
    %v2452 = vmul.f32 %v2446, 1.442695
    %v2453 = vpow.pop %v2452
    %v2454 = vmul.f32 %v2447, 1.442695
    %v2455 = vpow.pop %v2454
    %v2456 = vadd.f32 %v2449, 1.0
    %v2457 = vadd.f32 %v2451, 1.0
    %v2458 = vadd.f32 %v2453, 1.0
    %v2459 = vadd.f32 %v2455, 1.0
    %v2460 = vrcp.pop %v2456
    %v2461 = vmul.f32 1.0, %v2460
    %v2462 = vrcp.pop %v2457
    %v2463 = vmul.f32 1.0, %v2462
    %v2464 = vrcp.pop %v2458
    %v2465 = vmul.f32 1.0, %v2464
    %v2466 = vrcp.pop %v2459
    %v2467 = vmul.f32 1.0, %v2466
    %v2472 = vcombine.low %v2461, %v2463
    %v2473 = vcombine.low %v2465, %v2467
    %v2475 = vunpack.c.l.s4 1966171168
    %v2476 = vunpack.c.0.s8 %v2475
    %v2477 = vlaneseq
    %v2478 = vshrl.u32 %v2477, 7
    %v2479 = vsub.s32 %v2476, %v2478
    %v2480 = vrot.slane %v2472, %v2479
    %v2482 = vunpack.c.l.s4 1966171168
    %v2483 = vunpack.c.0.s8 %v2482
    %v2484 = vlaneseq
    %v2485 = vshrl.u32 %v2484, 7
    %v2486 = vsub.s32 %v2483, %v2485
    %v2487 = vrot.slane %v2473, %v2486
    %v2488 = vcombine.low %v2480, %v2487
    %v2490 = vunpack.c.l.s4 1966171168
    %v2491 = vunpack.c.0.s8 %v2490
    %v2492 = vlaneseq
    %v2493 = vshrl.u32 %v2492, 7
    %v2494 = vsub.s32 %v2491, %v2493
    %v2495 = vrot.slane %v2488, %v2494
    %s2497 = scalar_lea.vmem [#allocation8], 4
    %2498 = vst.msk [vmem:[%s2497] sm:$0xf] %vm1307, %v2495
    // Predicated region
    $region26: #{tpu_custom_call.1} parent=1 // pred_check
      _
    $region27: #{tpu_custom_call.1} parent=1 // pred_check_branch
      %2500 = sbr.rel (0) target = $region29
    $region28: #{tpu_custom_call.1} parent=1 // pred_region
      %s2502 = ssub.s32 128, 128
      %2503 = vsyncadd [#allocation5], %s2502
      %s2504 = sshll.u32 [#allocation8], 4
      %s2505 = int_to_ptr.vmem [resolvable:$true] %s2504
      %2510 = dma.vmem_to_hbm [thread:$0]  %s2505, 128, %s4, [#allocation5], 64, 64, 4
    $region29: #{tpu_custom_call.1} parent=1 // pred_fallthru
      _
    // Predicated region
    $region30: #{tpu_custom_call.1} parent=1 // pred_check
      _
    $region31: #{tpu_custom_call.1} parent=1 // pred_check_branch
      %2512 = sbr.rel (0) target = $region33
    $region32: #{tpu_custom_call.1} parent=1 // pred_region
      %2513 = dma.done [#allocation5], 128
    $region33: #{tpu_custom_call.1} parent=1 // pred_fallthru
      _
    %2514 = vsyncpa [#allocation4], 1
    %2515 = vsyncpa [#allocation7], 1
    %2516 = vsyncpa [#allocation5], 1

</llo_original>
